<compile_context>
chip_gen: v6e
topology: v6e:2x2x1
jax: 0.10.0
libtpu: 0.0.40
codegen_flags: <defaults>
</compile_context>

<pallas_src>
import jax
import jax.numpy as jnp
from jax.experimental import pallas as pl
from jax.experimental.pallas import tpu as pltpu


def gnn_kernel(edge_ref, batch_ref, x_ref, w_ref, b_ref, out_ref):
    f32 = jnp.float32
    n, feats = x_ref.shape
    hidden = w_ref.shape[1]
    num_edges = edge_ref.shape[1]
    num_graphs, num_classes = out_ref.shape

    # ---- dense adjacency, built scatter-free on the MXU -------------------
    # A[t, s] = #edges s -> t  (multi-edges accumulate via the contraction).
    ei = edge_ref[...]                                         # (2, E) int32
    src = ei[0:1, :]                                           # (1, E)
    dst = ei[1:2, :]                                           # (1, E)
    node_iota = jax.lax.broadcasted_iota(jnp.int32, (n, num_edges), 0)
    src_oh = (src == node_iota).astype(f32)                    # (N, E)
    dst_oh = (dst == node_iota).astype(f32)                    # (N, E)
    a = jax.lax.dot_general(dst_oh, src_oh,
                            (((1,), (1,)), ((), ())),
                            preferred_element_type=f32)        # (N, N)

    # ---- global_mean_pool matrix (kept f32 for exact means) ---------------
    bt = batch_ref[...]                                        # (1, N) int32
    g_iota = jax.lax.broadcasted_iota(jnp.int32, (num_graphs, n), 0)
    gmask = (bt == g_iota).astype(f32)                         # (G, N)
    counts = jnp.sum(gmask, axis=1, keepdims=True)             # (G, 1)
    p = gmask / jnp.maximum(counts, 1.0)                       # (G, N)

    # ---- static slab offsets ----------------------------------------------
    o1r, o1t = 0, feats
    o2r, o2t = 2 * feats, 2 * feats + hidden
    o3r, o3t = 2 * feats + 2 * hidden, 2 * feats + 3 * hidden
    olin = 2 * feats + 4 * hidden

    def graph_conv(h, w_rel, w_root, b_row):
        # neighbor sum (aggr='add') on the MXU, then rel/root projections
        agg = jnp.dot(a, h, preferred_element_type=f32)        # (N, F_in)
        return (jnp.dot(agg, w_rel, preferred_element_type=f32)
                + jnp.dot(h, w_root, preferred_element_type=f32)
                + b_row)                                       # (N, H)

    x = x_ref[...]                                             # (N, F) f32
    h = graph_conv(x,
                   w_ref[o1r:o1r + feats, :], w_ref[o1t:o1t + feats, :],
                   b_ref[0:1, :])
    h = jnp.maximum(h, 0.0)                                    # relu
    h = graph_conv(h,
                   w_ref[o2r:o2r + hidden, :], w_ref[o2t:o2t + hidden, :],
                   b_ref[1:2, :])
    h = jnp.maximum(h, 0.0)                                    # relu
    h = graph_conv(h,
                   w_ref[o3r:o3r + hidden, :], w_ref[o3t:o3t + hidden, :],
                   b_ref[2:3, :])                              # (N, H)

    # F.dropout(p=0.5) -> identity at inference time
    # tail kept in f32: out = P @ (h @ W_lin_pad) + b_lin_pad, sliced to C cols
    hw = jnp.dot(h, w_ref[olin:olin + hidden, :],
                 preferred_element_type=f32)                   # (N, H)
    pooled = jnp.dot(p, hw, preferred_element_type=f32) + b_ref[3:4, :]  # (G, H)
    out_ref[...] = pooled[:, 0:num_classes]                    # (G, C)


def gnn_forward(x, edge_index, batch, params, num_graphs):
    """Glue: no graph-matrix construction here — just dtype/shape plumbing."""
    n, feats = x.shape
    hidden = params["hidden"]
    num_classes = params["num_classes"]
    num_edges = edge_index.shape[1]

    args = (
        edge_index.astype(jnp.int32),               # (2, E)
        batch.astype(jnp.int32).reshape(1, n),      # (1, N)
        x.astype(jnp.float32),                      # (N, F)
        params["w_slab"],                           # (2F + 5H, H) f32
        params["b_slab"],                           # (4, H)       f32
    )

    # advisory cost estimate so XLA can overlap surrounding ops
    flops = 2 * n * n * num_edges                   # adjacency one-hot contraction
    flops += 2 * num_graphs * n                     # pooling normalization
    for f_in in (feats, hidden, hidden):
        flops += 2 * n * n * f_in                   # A @ h
        flops += 2 * 2 * n * f_in * hidden          # rel + root projections
    flops += 2 * n * hidden * hidden                # h @ W_lin_pad
    flops += 2 * num_graphs * n * hidden            # P @ (.)
    bytes_accessed = (sum(int(a_.size) * a_.dtype.itemsize for a_ in args)
                      + num_graphs * num_classes * 4)

    vmem = pl.BlockSpec(memory_space=pltpu.MemorySpace.VMEM)
    out = pl.pallas_call(
        gnn_kernel,
        out_shape=jax.ShapeDtypeStruct((num_graphs, num_classes), jnp.float32),
        in_specs=[vmem] * len(args),
        out_specs=vmem,
        cost_estimate=pl.CostEstimate(flops=int(flops),
                                      transcendentals=0,
                                      bytes_accessed=int(bytes_accessed)),
    )(*args)
    return out


def init_params(key, num_features, hidden, num_classes):
    """Deterministic synthetic parameters, pre-packed for the fused kernel."""
    ks = jax.random.split(key, 9)
    scale = 0.1

    def w(k, shape):
        return scale * jax.random.normal(k, shape, jnp.float32)

    w1_rel, w1_root = w(ks[0], (num_features, hidden)), w(ks[1], (num_features, hidden))
    w2_rel, w2_root = w(ks[2], (hidden, hidden)), w(ks[3], (hidden, hidden))
    w3_rel, w3_root = w(ks[4], (hidden, hidden)), w(ks[5], (hidden, hidden))
    w_lin = w(ks[6], (hidden, num_classes))
    b_lin = scale * jax.random.normal(ks[7], (num_classes,), jnp.float32)
    b_conv = scale * jax.random.normal(ks[8], (3, hidden), jnp.float32)

    # W_lin padded to (H, H): logits live in the first C columns, rest are zero.
    w_lin_pad = jnp.zeros((hidden, hidden), jnp.float32).at[:, :num_classes].set(w_lin)
    w_slab = jnp.concatenate(
        [w1_rel, w1_root, w2_rel, w2_root, w3_rel, w3_root, w_lin_pad], axis=0)

    b_slab = jnp.zeros((4, hidden), jnp.float32)
    b_slab = b_slab.at[0:3, :].set(b_conv)                       # lin_rel biases
    b_slab = b_slab.at[3, :num_classes].set(b_lin)               # padded b_lin

    return {"w_slab": w_slab, "b_slab": b_slab,
            "hidden": hidden, "num_classes": num_classes}


if __name__ == "__main__":
    N, FEATS, HIDDEN, CLASSES, GRAPHS = 64, 16, 32, 4, 8

    key = jax.random.PRNGKey(0)
    k_x, k_p = jax.random.split(key)

    # node features
    x = jax.random.normal(k_x, (N, FEATS), jnp.float32)

    # synthetic bidirectional ring graph: edge_index is (2, E) = [source; target]
    nodes = jnp.arange(N, dtype=jnp.int32)
    src = jnp.concatenate([nodes, (nodes + 1) % N])
    dst = jnp.concatenate([(nodes + 1) % N, nodes])
    edge_index = jnp.stack([src, dst])        # (2, 2N)

    # batch vector: N nodes split evenly across GRAPHS graphs
    batch = jnp.repeat(jnp.arange(GRAPHS, dtype=jnp.int32), N // GRAPHS)

    params = init_params(k_p, FEATS, HIDDEN, CLASSES)

    out = gnn_forward(x, edge_index, batch, params, GRAPHS)
    out = jax.block_until_ready(out)
    assert out.shape == (GRAPHS, CLASSES)
    assert jnp.all(jnp.isfinite(out))
    print("KERNEL_OK")
</pallas_src>

<mosaic_0001>
module attributes {stable_mosaic.version = 11 : i64} {
  func.func @gnn_kernel(%arg0: memref<2x128xi32, #tpu.memory_space<vmem>>, %arg1: memref<1x64xi32, #tpu.memory_space<vmem>>, %arg2: memref<64x16xf32, #tpu.memory_space<vmem>>, %arg3: memref<192x32xf32, #tpu.memory_space<vmem>>, %arg4: memref<4x32xf32, #tpu.memory_space<vmem>>, %arg5: memref<8x4xf32, #tpu.memory_space<vmem>>) attributes {dimension_semantics = [], scalar_prefetch = 0 : i64, scratch_operands = 0 : i64, tpu.core_type = #tpu.core_type<tc>} {
    %c0 = arith.constant 0 : index
    %c0_0 = arith.constant 0 : index
    %0 = vector.load %arg0[%c0, %c0_0] : memref<2x128xi32, #tpu.memory_space<vmem>>, vector<2x128xi32>
    %1 = vector.extract_strided_slice %0 {offsets = [0, 0], sizes = [1, 128], strides = [1, 1]} : vector<2x128xi32> to vector<1x128xi32>
    %2 = vector.extract_strided_slice %0 {offsets = [1, 0], sizes = [1, 128], strides = [1, 1]} : vector<2x128xi32> to vector<1x128xi32>
    %3 = tpu.iota {dimensions = array<i32: 0>} : vector<64x128xi32>
    %4 = vector.broadcast %1 : vector<1x128xi32> to vector<64x128xi32>
    %5 = arith.cmpi eq, %4, %3 : vector<64x128xi32>
    %6 = arith.extui %5 : vector<64x128xi1> to vector<64x128xi32>
    %7 = arith.sitofp %6 : vector<64x128xi32> to vector<64x128xf32>
    %8 = vector.broadcast %2 : vector<1x128xi32> to vector<64x128xi32>
    %9 = arith.cmpi eq, %8, %3 : vector<64x128xi32>
    %10 = arith.extui %9 : vector<64x128xi1> to vector<64x128xi32>
    %11 = arith.sitofp %10 : vector<64x128xi32> to vector<64x128xf32>
    %cst = arith.constant dense<0.000000e+00> : vector<64x64xf32>
    %12 = tpu.matmul %11, %7, %cst {dimension_numbers = #tpu.dot_dimension_numbers<[1], [1], [0], [0], [0, 0, 1, 0], [], []>} : vector<64x128xf32>, vector<64x128xf32>, vector<64x64xf32> -> vector<64x64xf32>
    %c0_1 = arith.constant 0 : index
    %c0_2 = arith.constant 0 : index
    %13 = vector.load %arg1[%c0_1, %c0_2] : memref<1x64xi32, #tpu.memory_space<vmem>>, vector<1x64xi32>
    %14 = tpu.iota {dimensions = array<i32: 0>} : vector<8x64xi32>
    %15 = vector.broadcast %13 : vector<1x64xi32> to vector<8x64xi32>
    %16 = arith.cmpi eq, %15, %14 : vector<8x64xi32>
    %17 = arith.extui %16 : vector<8x64xi1> to vector<8x64xi32>
    %18 = arith.sitofp %17 : vector<8x64xi32> to vector<8x64xf32>
    %cst_3 = arith.constant dense<0.000000e+00> : vector<8xf32>
    %19 = vector.multi_reduction <add>, %18, %cst_3 [1] : vector<8x64xf32> to vector<8xf32>
    %20 = vector.shape_cast %19 : vector<8xf32> to vector<8x1xf32>
    %cst_4 = arith.constant 1.000000e+00 : f32
    %21 = vector.broadcast %cst_4 : f32 to vector<8x1xf32>
    %22 = arith.maximumf %20, %21 : vector<8x1xf32>
    %23 = vector.broadcast %22 : vector<8x1xf32> to vector<8x64xf32>
    %24 = arith.divf %18, %23 : vector<8x64xf32>
    %c0_5 = arith.constant 0 : index
    %c0_6 = arith.constant 0 : index
    %25 = vector.load %arg2[%c0_5, %c0_6] : memref<64x16xf32, #tpu.memory_space<vmem>>, vector<64x16xf32>
    %c0_7 = arith.constant 0 : index
    %c0_8 = arith.constant 0 : index
    %26 = vector.load %arg3[%c0_7, %c0_8] : memref<192x32xf32, #tpu.memory_space<vmem>>, vector<16x32xf32>
    %c16 = arith.constant 16 : index
    %c0_9 = arith.constant 0 : index
    %27 = vector.load %arg3[%c16, %c0_9] : memref<192x32xf32, #tpu.memory_space<vmem>>, vector<16x32xf32>
    %c0_10 = arith.constant 0 : index
    %c0_11 = arith.constant 0 : index
    %28 = vector.load %arg4[%c0_10, %c0_11] : memref<4x32xf32, #tpu.memory_space<vmem>>, vector<1x32xf32>
    %cst_12 = arith.constant dense<0.000000e+00> : vector<64x16xf32>
    %29 = tpu.matmul %12, %25, %cst_12 {dimension_numbers = #tpu.dot_dimension_numbers<[1], [0], [0], [1], [0, 0, 1, 1], [], []>} : vector<64x64xf32>, vector<64x16xf32>, vector<64x16xf32> -> vector<64x16xf32>
    %cst_13 = arith.constant dense<0.000000e+00> : vector<64x32xf32>
    %30 = tpu.matmul %29, %26, %cst_13 {dimension_numbers = #tpu.dot_dimension_numbers<[1], [0], [0], [1], [0, 0, 1, 1], [], []>} : vector<64x16xf32>, vector<16x32xf32>, vector<64x32xf32> -> vector<64x32xf32>
    %cst_14 = arith.constant dense<0.000000e+00> : vector<64x32xf32>
    %31 = tpu.matmul %25, %27, %cst_14 {dimension_numbers = #tpu.dot_dimension_numbers<[1], [0], [0], [1], [0, 0, 1, 1], [], []>} : vector<64x16xf32>, vector<16x32xf32>, vector<64x32xf32> -> vector<64x32xf32>
    %32 = arith.addf %30, %31 : vector<64x32xf32>
    %33 = vector.broadcast %28 : vector<1x32xf32> to vector<64x32xf32>
    %34 = arith.addf %32, %33 : vector<64x32xf32>
    %cst_15 = arith.constant 0.000000e+00 : f32
    %35 = vector.broadcast %cst_15 : f32 to vector<64x32xf32>
    %36 = arith.maximumf %34, %35 : vector<64x32xf32>
    %c32 = arith.constant 32 : index
    %c0_16 = arith.constant 0 : index
    %37 = vector.load %arg3[%c32, %c0_16] : memref<192x32xf32, #tpu.memory_space<vmem>>, vector<32x32xf32>
    %c64 = arith.constant 64 : index
    %c0_17 = arith.constant 0 : index
    %38 = vector.load %arg3[%c64, %c0_17] : memref<192x32xf32, #tpu.memory_space<vmem>>, vector<32x32xf32>
    %c1 = arith.constant 1 : index
    %c0_18 = arith.constant 0 : index
    %39 = vector.load %arg4[%c1, %c0_18] : memref<4x32xf32, #tpu.memory_space<vmem>>, vector<1x32xf32>
    %cst_19 = arith.constant dense<0.000000e+00> : vector<64x32xf32>
    %40 = tpu.matmul %12, %36, %cst_19 {dimension_numbers = #tpu.dot_dimension_numbers<[1], [0], [0], [1], [0, 0, 1, 1], [], []>} : vector<64x64xf32>, vector<64x32xf32>, vector<64x32xf32> -> vector<64x32xf32>
    %cst_20 = arith.constant dense<0.000000e+00> : vector<64x32xf32>
    %41 = tpu.matmul %40, %37, %cst_20 {dimension_numbers = #tpu.dot_dimension_numbers<[1], [0], [0], [1], [0, 0, 1, 1], [], []>} : vector<64x32xf32>, vector<32x32xf32>, vector<64x32xf32> -> vector<64x32xf32>
    %cst_21 = arith.constant dense<0.000000e+00> : vector<64x32xf32>
    %42 = tpu.matmul %36, %38, %cst_21 {dimension_numbers = #tpu.dot_dimension_numbers<[1], [0], [0], [1], [0, 0, 1, 1], [], []>} : vector<64x32xf32>, vector<32x32xf32>, vector<64x32xf32> -> vector<64x32xf32>
    %43 = arith.addf %41, %42 : vector<64x32xf32>
    %44 = vector.broadcast %39 : vector<1x32xf32> to vector<64x32xf32>
    %45 = arith.addf %43, %44 : vector<64x32xf32>
    %cst_22 = arith.constant 0.000000e+00 : f32
    %46 = vector.broadcast %cst_22 : f32 to vector<64x32xf32>
    %47 = arith.maximumf %45, %46 : vector<64x32xf32>
    %c96 = arith.constant 96 : index
    %c0_23 = arith.constant 0 : index
    %48 = vector.load %arg3[%c96, %c0_23] : memref<192x32xf32, #tpu.memory_space<vmem>>, vector<32x32xf32>
    %c128 = arith.constant 128 : index
    %c0_24 = arith.constant 0 : index
    %49 = vector.load %arg3[%c128, %c0_24] : memref<192x32xf32, #tpu.memory_space<vmem>>, vector<32x32xf32>
    %c2 = arith.constant 2 : index
    %c0_25 = arith.constant 0 : index
    %50 = vector.load %arg4[%c2, %c0_25] : memref<4x32xf32, #tpu.memory_space<vmem>>, vector<1x32xf32>
    %cst_26 = arith.constant dense<0.000000e+00> : vector<64x32xf32>
    %51 = tpu.matmul %12, %47, %cst_26 {dimension_numbers = #tpu.dot_dimension_numbers<[1], [0], [0], [1], [0, 0, 1, 1], [], []>} : vector<64x64xf32>, vector<64x32xf32>, vector<64x32xf32> -> vector<64x32xf32>
    %cst_27 = arith.constant dense<0.000000e+00> : vector<64x32xf32>
    %52 = tpu.matmul %51, %48, %cst_27 {dimension_numbers = #tpu.dot_dimension_numbers<[1], [0], [0], [1], [0, 0, 1, 1], [], []>} : vector<64x32xf32>, vector<32x32xf32>, vector<64x32xf32> -> vector<64x32xf32>
    %cst_28 = arith.constant dense<0.000000e+00> : vector<64x32xf32>
    %53 = tpu.matmul %47, %49, %cst_28 {dimension_numbers = #tpu.dot_dimension_numbers<[1], [0], [0], [1], [0, 0, 1, 1], [], []>} : vector<64x32xf32>, vector<32x32xf32>, vector<64x32xf32> -> vector<64x32xf32>
    %54 = arith.addf %52, %53 : vector<64x32xf32>
    %55 = vector.broadcast %50 : vector<1x32xf32> to vector<64x32xf32>
    %56 = arith.addf %54, %55 : vector<64x32xf32>
    %c160 = arith.constant 160 : index
    %c0_29 = arith.constant 0 : index
    %57 = vector.load %arg3[%c160, %c0_29] : memref<192x32xf32, #tpu.memory_space<vmem>>, vector<32x32xf32>
    %cst_30 = arith.constant dense<0.000000e+00> : vector<64x32xf32>
    %58 = tpu.matmul %56, %57, %cst_30 {dimension_numbers = #tpu.dot_dimension_numbers<[1], [0], [0], [1], [0, 0, 1, 1], [], []>} : vector<64x32xf32>, vector<32x32xf32>, vector<64x32xf32> -> vector<64x32xf32>
    %cst_31 = arith.constant dense<0.000000e+00> : vector<8x32xf32>
    %59 = tpu.matmul %24, %58, %cst_31 {dimension_numbers = #tpu.dot_dimension_numbers<[1], [0], [0], [1], [0, 0, 1, 1], [], []>} : vector<8x64xf32>, vector<64x32xf32>, vector<8x32xf32> -> vector<8x32xf32>
    %c3 = arith.constant 3 : index
    %c0_32 = arith.constant 0 : index
    %60 = vector.load %arg4[%c3, %c0_32] : memref<4x32xf32, #tpu.memory_space<vmem>>, vector<1x32xf32>
    %61 = vector.broadcast %60 : vector<1x32xf32> to vector<8x32xf32>
    %62 = arith.addf %59, %61 : vector<8x32xf32>
    %63 = vector.extract_strided_slice %62 {offsets = [0, 0], sizes = [8, 4], strides = [1, 1]} : vector<8x32xf32> to vector<8x4xf32>
    %c0_33 = arith.constant 0 : index
    %c0_34 = arith.constant 0 : index
    %64 = vector.load %arg5[%c0_33, %c0_34] : memref<8x4xf32, #tpu.memory_space<vmem>>, vector<8x4xf32>
    tpu.vector_store %arg5[%c0_33, %c0_34], %63 {strides = array<i32>} : memref<8x4xf32, #tpu.memory_space<vmem>>, vector<8x4xf32>,
    return
  }
}

</mosaic_0001>

<llo_original>
// kernel: tpu_custom_call.1
$region0: #{tpu_custom_call.1}
  #allocation0 [shape = 'u32[]', space=smem, size = 0x4, offset = 0x4, fixed_abs, tag = 'smem constant byte address 0x4 - core index']
  #allocation1 [shape = 'u32[144,128]{1,0:T(1,128)}', space=vmem, size = 0x12000, scoped, tag = 'internal scratch']
  %s0 = inlined_call_operand.vmem [shape: s32[2,128], index: 0, kind: input, shape index: {}]
  %s1 = inlined_call_operand.vmem [shape: s32[1,64], index: 1, kind: input, shape index: {}]
  %s2 = inlined_call_operand.vmem [shape: f32[64,16], index: 2, kind: input, shape index: {}]
  %s3 = inlined_call_operand.vmem [shape: f32[192,32], index: 3, kind: input, shape index: {}]
  %s4 = inlined_call_operand.vmem [shape: f32[4,32], index: 4, kind: input, shape index: {}]
  %s5 = inlined_call_operand.vmem [shape: f32[8,4], index: 5, kind: output, shape index: {}]
  %s6 = sld [smem:[#allocation0]]
  $region30: #{tpu_custom_call.1} parent=0
    _
  %s8 = ssub.s32 1, %s6
  %s9 = scalar_select 0, %s8, %s6
  // Predicated region
  $region2: #{tpu_custom_call.1} parent=0 // pred_check
    _
  $region3: #{tpu_custom_call.1} parent=0 // pred_check_branch
    %11 = sbr.rel (0) target = $region5
  $region4: #{tpu_custom_call.1} parent=0 // pred_region
    _
  $region5: #{tpu_custom_call.1} parent=0 // pred_fallthru
    _
  // Predicated region
  $region6: #{tpu_custom_call.1} parent=0 // pred_check
    _
  $region7: #{tpu_custom_call.1} parent=0 // pred_check_branch
    %13 = sbr.rel (0) target = $region9
  $region8: #{tpu_custom_call.1} parent=0 // pred_region
    _
  $region9: #{tpu_custom_call.1} parent=0 // pred_fallthru
    _
  // Predicated region
  $region10: #{tpu_custom_call.1} parent=0 // pred_check
    _
  $region11: #{tpu_custom_call.1} parent=0 // pred_check_branch
    %15 = sbr.rel (0) target = $region13
  $region12: #{tpu_custom_call.1} parent=0 // pred_region
    _
  $region13: #{tpu_custom_call.1} parent=0 // pred_fallthru
    _
  // Predicated region
  $region14: #{tpu_custom_call.1} parent=0 // pred_check
    _
  $region15: #{tpu_custom_call.1} parent=0 // pred_check_branch
    %17 = sbr.rel (0) target = $region17
  $region16: #{tpu_custom_call.1} parent=0 // pred_region
    _
  $region17: #{tpu_custom_call.1} parent=0 // pred_fallthru
    _
  // Predicated region
  $region18: #{tpu_custom_call.1} parent=0 // pred_check
    _
  $region19: #{tpu_custom_call.1} parent=0 // pred_check_branch
    %19 = sbr.rel (0) target = $region21
  $region20: #{tpu_custom_call.1} parent=0 // pred_region
    _
  $region21: #{tpu_custom_call.1} parent=0 // pred_fallthru
    _
  %v20 = vld [vmem:[%s0] sm:$0x3]
  %v21 = vlaneseq
  %v22 = vshrl.u32 %v21, 7
  %v23 = vadd.s32 %v22, 8
  %v24 = vadd.s32 %v22, 16
  %v25 = vadd.s32 %v22, 24
  %v26 = vadd.s32 %v22, 32
  %v27 = vadd.s32 %v22, 40
  %v28 = vadd.s32 %v22, 48
  %v29 = vadd.s32 %v22, 56
  %v30 = vlaneseq
  %v31 = vshrl.u32 %v30, 7
  %v32 = vsub.s32 0, %v31
  %v33 = vrot.slane %v20, %v32
  %vm34 = vcmp.eq.s32.totalorder %v33, %v22
  %vm35 = vcmp.eq.s32.totalorder %v33, %v23
  %vm36 = vcmp.eq.s32.totalorder %v33, %v24
  %vm37 = vcmp.eq.s32.totalorder %v33, %v25
  %vm38 = vcmp.eq.s32.totalorder %v33, %v26
  %vm39 = vcmp.eq.s32.totalorder %v33, %v27
  %vm40 = vcmp.eq.s32.totalorder %v33, %v28
  %vm41 = vcmp.eq.s32.totalorder %v33, %v29
  %v42 = vsel %vm34, 1, 0
  %v43 = vsel %vm35, 1, 0
  %v44 = vsel %vm36, 1, 0
  %v45 = vsel %vm37, 1, 0
  %v46 = vsel %vm38, 1, 0
  %v47 = vsel %vm39, 1, 0
  %v48 = vsel %vm40, 1, 0
  %v49 = vsel %vm41, 1, 0
  %v50 = vcvt.s32.f32 %v42
  %v51 = vcvt.s32.f32 %v43
  %v52 = vcvt.s32.f32 %v44
  %v53 = vcvt.s32.f32 %v45
  %v54 = vcvt.s32.f32 %v46
  %v55 = vcvt.s32.f32 %v47
  %v56 = vcvt.s32.f32 %v48
  %v57 = vcvt.s32.f32 %v49
  %v58 = vlaneseq
  %v59 = vshrl.u32 %v58, 7
  %v60 = vsub.s32 1, %v59
  %v61 = vrot.slane %v20, %v60
  %vm62 = vcmp.eq.s32.totalorder %v61, %v22
  %vm63 = vcmp.eq.s32.totalorder %v61, %v23
  %vm64 = vcmp.eq.s32.totalorder %v61, %v24
  %vm65 = vcmp.eq.s32.totalorder %v61, %v25
  %vm66 = vcmp.eq.s32.totalorder %v61, %v26
  %vm67 = vcmp.eq.s32.totalorder %v61, %v27
  %vm68 = vcmp.eq.s32.totalorder %v61, %v28
  %vm69 = vcmp.eq.s32.totalorder %v61, %v29
  %v70 = vsel %vm62, 1, 0
  %v71 = vsel %vm63, 1, 0
  %v72 = vsel %vm64, 1, 0
  %v73 = vsel %vm65, 1, 0
  %v74 = vsel %vm66, 1, 0
  %v75 = vsel %vm67, 1, 0
  %v76 = vsel %vm68, 1, 0
  %v77 = vsel %vm69, 1, 0
  %v78 = vcvt.s32.f32 %v70
  %v79 = vcvt.s32.f32 %v71
  %v80 = vcvt.s32.f32 %v72
  %v81 = vcvt.s32.f32 %v73
  %v82 = vcvt.s32.f32 %v74
  %v83 = vcvt.s32.f32 %v75
  %v84 = vcvt.s32.f32 %v76
  %v85 = vcvt.s32.f32 %v77
  %86 = vmatprep.subr.mxu0 0.0
  %87 = vmatpush1.xpose.msra.mxu0 0.0
  %88 = vmatprep.subr.mxu0 0.0
  %89 = vmatpush1.xpose.msra.mxu0 0.0
  %90 = vmatprep.subr.mxu0 0.0
  %91 = vmatpush1.xpose.msra.mxu0 0.0
  %92 = vmatprep.subr.mxu0 0.0
  %93 = vmatpush1.xpose.msra.mxu0 0.0
  %94 = vmatprep.subr.mxu0 0.0
  %95 = vmatpush1.xpose.msra.mxu0 0.0
  %96 = vmatprep.subr.mxu0 0.0
  %97 = vmatpush1.xpose.msra.mxu0 0.0
  %98 = vmatprep.subr.mxu0 0.0
  %99 = vmatpush1.xpose.msra.mxu0 0.0
  %100 = vmatprep.subr.mxu0 0.0
  %101 = vmatpush1.xpose.msra.mxu0 0.0
  %102 = vmatprep.subr.mxu0 0.0
  %103 = vmatpush1.xpose.msra.mxu0 %v57
  %104 = vmatprep.subr.mxu0 0.0
  %105 = vmatpush1.xpose.msra.mxu0 %v56
  %106 = vmatprep.subr.mxu0 0.0
  %107 = vmatpush1.xpose.msra.mxu0 %v55
  %108 = vmatprep.subr.mxu0 0.0
  %109 = vmatpush1.xpose.msra.mxu0 %v54
  %110 = vmatprep.subr.mxu0 0.0
  %111 = vmatpush1.xpose.msra.mxu0 %v53
  %112 = vmatprep.subr.mxu0 0.0
  %113 = vmatpush1.xpose.msra.mxu0 %v52
  %114 = vmatprep.subr.mxu0 0.0
  %115 = vmatpush1.xpose.msra.mxu0 %v51
  %116 = vmatprep.subr.mxu0 0.0
  %117 = vmatpush1.xpose.msra.mxu0 %v50
  %118 = vmatprep.subr.mxu0 0.0
  %119 = vmatpush2.xpose.msra.mxu0 0.0
  %120 = vmatprep.subr.mxu0 0.0
  %121 = vmatpush2.xpose.msra.mxu0 0.0
  %122 = vmatprep.subr.mxu0 0.0
  %123 = vmatpush2.xpose.msra.mxu0 0.0
  %124 = vmatprep.subr.mxu0 0.0
  %125 = vmatpush2.xpose.msra.mxu0 0.0
  %126 = vmatprep.subr.mxu0 0.0
  %127 = vmatpush2.xpose.msra.mxu0 0.0
  %128 = vmatprep.subr.mxu0 0.0
  %129 = vmatpush2.xpose.msra.mxu0 0.0
  %130 = vmatprep.subr.mxu0 0.0
  %131 = vmatpush2.xpose.msra.mxu0 0.0
  %132 = vmatprep.subr.mxu0 0.0
  %133 = vmatpush2.xpose.msra.mxu0 0.0
  %134 = vmatprep.subr.mxu0 0.0
  %135 = vmatpush2.xpose.msra.mxu0 0.0
  %136 = vmatprep.subr.mxu0 0.0
  %137 = vmatpush2.xpose.msra.mxu0 0.0
  %138 = vmatprep.subr.mxu0 0.0
  %139 = vmatpush2.xpose.msra.mxu0 0.0
  %140 = vmatprep.subr.mxu0 0.0
  %141 = vmatpush2.xpose.msra.mxu0 0.0
  %142 = vmatprep.subr.mxu0 0.0
  %143 = vmatpush2.xpose.msra.mxu0 0.0
  %144 = vmatprep.subr.mxu0 0.0
  %145 = vmatpush2.xpose.msra.mxu0 0.0
  %146 = vmatprep.subr.mxu0 0.0
  %147 = vmatpush2.xpose.msra.mxu0 0.0
  %148 = vmatprep.subr.mxu0 0.0
  %149 = vmatpush2.xpose.msra.mxu0 0.0
  %150 = vmatprep.mubr.f32.mxu0 0.0
  %151 = vmatmul.mubr.f32.gmra.mxu0 %v78
  %v152 = vpop.f32.mrf.mxu0
  %v153 = vadd.f32 0.0, %v152
  %v154 = vpop.f32.mrf.mxu0
  %155 = vmatprep.mubr.f32.mxu0 0.0
  %156 = vmatmul.mubr.f32.gmra.mxu0 %v79
  %v157 = vpop.f32.mrf.mxu0
  %v158 = vadd.f32 0.0, %v157
  %v159 = vpop.f32.mrf.mxu0
  %160 = vmatprep.mubr.f32.mxu0 0.0
  %161 = vmatmul.mubr.f32.gmra.mxu0 %v80
  %v162 = vpop.f32.mrf.mxu0
  %v163 = vadd.f32 0.0, %v162
  %v164 = vpop.f32.mrf.mxu0
  %165 = vmatprep.mubr.f32.mxu0 0.0
  %166 = vmatmul.mubr.f32.gmra.mxu0 %v81
  %v167 = vpop.f32.mrf.mxu0
  %v168 = vadd.f32 0.0, %v167
  %v169 = vpop.f32.mrf.mxu0
  %170 = vmatprep.mubr.f32.mxu0 0.0
  %171 = vmatmul.mubr.f32.gmra.mxu0 %v82
  %v172 = vpop.f32.mrf.mxu0
  %v173 = vadd.f32 0.0, %v172
  %v174 = vpop.f32.mrf.mxu0
  %175 = vmatprep.mubr.f32.mxu0 0.0
  %176 = vmatmul.mubr.f32.gmra.mxu0 %v83
  %v177 = vpop.f32.mrf.mxu0
  %v178 = vadd.f32 0.0, %v177
  %v179 = vpop.f32.mrf.mxu0
  %180 = vmatprep.mubr.f32.mxu0 0.0
  %181 = vmatmul.mubr.f32.gmra.mxu0 %v84
  %v182 = vpop.f32.mrf.mxu0
  %v183 = vadd.f32 0.0, %v182
  %v184 = vpop.f32.mrf.mxu0
  %185 = vmatprep.mubr.f32.mxu0 0.0
  %186 = vmatmul.mubr.f32.gmra.mxu0 %v85
  %v187 = vpop.f32.mrf.mxu0
  %v188 = vadd.f32 0.0, %v187
  %v189 = vpop.f32.mrf.mxu0
  %190 = vdwg.mxu0
  %v191 = vld [vmem:[%s1] sm:$0x1]
  %v192 = vlaneseq
  %v193 = vshrl.u32 %v192, 7
  %v194 = vsub.s32 0, %v193
  %v195 = vrot.slane %v191, %v194
  %vm196 = vcmp.eq.s32.totalorder %v195, %v22
  %v197 = vsel %vm196, 1, 0
  %v198 = vcvt.s32.f32 %v197
  %vm199 = vcmask 523264
  %v200 = vsel %vm199, %v198, 0.0
  %201 = vadd.xlane.f32.xlu0 %v200
  %v202 = vpop.xlane.xlu0 %201
  %v203 = vmax.f32 %v202, 1.0
  %v204 = vrcp.pop %v203
  %v205 = vmul.f32 %v198, %v204
  %v206 = vld [vmem:[%s2] sm:$0xff]
  %v207 = vld [vmem:[%s2 + $0x8] sm:$0xff]
  %v208 = vld [vmem:[%s2 + $0x10] sm:$0xff]
  %v209 = vld [vmem:[%s2 + $0x18] sm:$0xff]
  %v210 = vld [vmem:[%s2 + $0x20] sm:$0xff]
  %v211 = vld [vmem:[%s2 + $0x28] sm:$0xff]
  %v212 = vld [vmem:[%s2 + $0x30] sm:$0xff]
  %v213 = vld [vmem:[%s2 + $0x38] sm:$0xff]
  %v214 = vld [vmem:[%s3] sm:$0xff]
  %v215 = vld [vmem:[%s3 + $0x8] sm:$0xff]
  %v216 = vld [vmem:[%s3 + $0x10] sm:$0xff]
  %v217 = vld [vmem:[%s3 + $0x18] sm:$0xff]
  %v218 = vld [vmem:[%s4] sm:$0x1]
  %v220 = vsel %vm199, %v153, 0
  %v223 = vsel %vm199, %v158, 0
  %v226 = vsel %vm199, %v163, 0
  %v229 = vsel %vm199, %v168, 0
  %v232 = vsel %vm199, %v173, 0
  %v235 = vsel %vm199, %v178, 0
  %v238 = vsel %vm199, %v183, 0
  %v241 = vsel %vm199, %v188, 0
  %243 = vmatprep.subr.mxu0 0.0
  %244 = vmatpush1.msra.mxu0 0.0
  %245 = vmatprep.subr.mxu0 0.0
  %246 = vmatpush1.msra.mxu0 0.0
  %247 = vmatprep.subr.mxu0 0.0
  %248 = vmatpush1.msra.mxu0 0.0
  %249 = vmatprep.subr.mxu0 0.0
  %250 = vmatpush1.msra.mxu0 0.0
  %251 = vmatprep.subr.mxu0 0.0
  %252 = vmatpush1.msra.mxu0 0.0
  %253 = vmatprep.subr.mxu0 0.0
  %254 = vmatpush1.msra.mxu0 0.0
  %255 = vmatprep.subr.mxu0 0.0
  %256 = vmatpush1.msra.mxu0 0.0
  %257 = vmatprep.subr.mxu0 0.0
  %258 = vmatpush1.msra.mxu0 0.0
  %259 = vmatprep.subr.mxu0 0.0
  %260 = vmatpush1.msra.mxu0 %v213
  %261 = vmatprep.subr.mxu0 0.0
  %262 = vmatpush1.msra.mxu0 %v212
  %263 = vmatprep.subr.mxu0 0.0
  %264 = vmatpush1.msra.mxu0 %v211
  %265 = vmatprep.subr.mxu0 0.0
  %266 = vmatpush1.msra.mxu0 %v210
  %267 = vmatprep.subr.mxu0 0.0
  %268 = vmatpush1.msra.mxu0 %v209
  %269 = vmatprep.subr.mxu0 0.0
  %270 = vmatpush1.msra.mxu0 %v208
  %271 = vmatprep.subr.mxu0 0.0
  %272 = vmatpush1.msra.mxu0 %v207
  %273 = vmatprep.subr.mxu0 0.0
  %274 = vmatpush1.msra.mxu0 %v206
  %275 = vmatprep.subr.mxu0 0.0
  %276 = vmatpush2.msra.mxu0 0.0
  %277 = vmatprep.subr.mxu0 0.0
  %278 = vmatpush2.msra.mxu0 0.0
  %279 = vmatprep.subr.mxu0 0.0
  %280 = vmatpush2.msra.mxu0 0.0
  %281 = vmatprep.subr.mxu0 0.0
  %282 = vmatpush2.msra.mxu0 0.0
  %283 = vmatprep.subr.mxu0 0.0
  %284 = vmatpush2.msra.mxu0 0.0
  %285 = vmatprep.subr.mxu0 0.0
  %286 = vmatpush2.msra.mxu0 0.0
  %287 = vmatprep.subr.mxu0 0.0
  %288 = vmatpush2.msra.mxu0 0.0
  %289 = vmatprep.subr.mxu0 0.0
  %290 = vmatpush2.msra.mxu0 0.0
  %291 = vmatprep.subr.mxu0 0.0
  %292 = vmatpush2.msra.mxu0 0.0
  %293 = vmatprep.subr.mxu0 0.0
  %294 = vmatpush2.msra.mxu0 0.0
  %295 = vmatprep.subr.mxu0 0.0
  %296 = vmatpush2.msra.mxu0 0.0
  %297 = vmatprep.subr.mxu0 0.0
  %298 = vmatpush2.msra.mxu0 0.0
  %299 = vmatprep.subr.mxu0 0.0
  %300 = vmatpush2.msra.mxu0 0.0
  %301 = vmatprep.subr.mxu0 0.0
  %302 = vmatpush2.msra.mxu0 0.0
  %303 = vmatprep.subr.mxu0 0.0
  %304 = vmatpush2.msra.mxu0 0.0
  %305 = vmatprep.subr.mxu0 0.0
  %306 = vmatpush2.msra.mxu0 0.0
  %307 = vmatprep.mubr.f32.mxu0 0.0
  %308 = vmatmul.mubr.f32.gmra.mxu0 %v220
  %v309 = vpop.f32.mrf.mxu0
  %v310 = vadd.f32 0.0, %v309
  %v311 = vpop.f32.mrf.mxu0
  %312 = vmatprep.mubr.f32.mxu0 0.0
  %313 = vmatmul.mubr.f32.gmra.mxu0 %v223
  %v314 = vpop.f32.mrf.mxu0
  %v315 = vadd.f32 0.0, %v314
  %v316 = vpop.f32.mrf.mxu0
  %317 = vmatprep.mubr.f32.mxu0 0.0
  %318 = vmatmul.mubr.f32.gmra.mxu0 %v226
  %v319 = vpop.f32.mrf.mxu0
  %v320 = vadd.f32 0.0, %v319
  %v321 = vpop.f32.mrf.mxu0
  %322 = vmatprep.mubr.f32.mxu0 0.0
  %323 = vmatmul.mubr.f32.gmra.mxu0 %v229
  %v324 = vpop.f32.mrf.mxu0
  %v325 = vadd.f32 0.0, %v324
  %v326 = vpop.f32.mrf.mxu0
  %327 = vmatprep.mubr.f32.mxu0 0.0
  %328 = vmatmul.mubr.f32.gmra.mxu0 %v232
  %v329 = vpop.f32.mrf.mxu0
  %v330 = vadd.f32 0.0, %v329
  %v331 = vpop.f32.mrf.mxu0
  %332 = vmatprep.mubr.f32.mxu0 0.0
  %333 = vmatmul.mubr.f32.gmra.mxu0 %v235
  %v334 = vpop.f32.mrf.mxu0
  %v335 = vadd.f32 0.0, %v334
  %v336 = vpop.f32.mrf.mxu0
  %337 = vmatprep.mubr.f32.mxu0 0.0
  %338 = vmatmul.mubr.f32.gmra.mxu0 %v238
  %v339 = vpop.f32.mrf.mxu0
  %v340 = vadd.f32 0.0, %v339
  %v341 = vpop.f32.mrf.mxu0
  %342 = vmatprep.mubr.f32.mxu0 0.0
  %343 = vmatmul.mubr.f32.gmra.mxu0 %v241
  %v344 = vpop.f32.mrf.mxu0
  %v345 = vadd.f32 0.0, %v344
  %v346 = vpop.f32.mrf.mxu0
  %347 = vdwg.mxu0
  %vm348 = vcmask 130048
  %v350 = vsel %vm348, %v206, 0
  %v353 = vsel %vm348, %v207, 0
  %v356 = vsel %vm348, %v208, 0
  %v359 = vsel %vm348, %v209, 0
  %v362 = vsel %vm348, %v210, 0
  %v365 = vsel %vm348, %v211, 0
  %v368 = vsel %vm348, %v212, 0
  %v371 = vsel %vm348, %v213, 0
  %373 = vmatprep.subr.mxu0 0.0
  %374 = vmatpush1.msra.mxu0 0.0
  %375 = vmatprep.subr.mxu0 0.0
  %376 = vmatpush1.msra.mxu0 0.0
  %377 = vmatprep.subr.mxu0 0.0
  %378 = vmatpush1.msra.mxu0 0.0
  %379 = vmatprep.subr.mxu0 0.0
  %380 = vmatpush1.msra.mxu0 0.0
  %381 = vmatprep.subr.mxu0 0.0
  %382 = vmatpush1.msra.mxu0 0.0
  %383 = vmatprep.subr.mxu0 0.0
  %384 = vmatpush1.msra.mxu0 0.0
  %385 = vmatprep.subr.mxu0 0.0
  %386 = vmatpush1.msra.mxu0 0.0
  %387 = vmatprep.subr.mxu0 0.0
  %388 = vmatpush1.msra.mxu0 0.0
  %389 = vmatprep.subr.mxu0 0.0
  %390 = vmatpush1.msra.mxu0 0.0
  %391 = vmatprep.subr.mxu0 0.0
  %392 = vmatpush1.msra.mxu0 0.0
  %393 = vmatprep.subr.mxu0 0.0
  %394 = vmatpush1.msra.mxu0 0.0
  %395 = vmatprep.subr.mxu0 0.0
  %396 = vmatpush1.msra.mxu0 0.0
  %397 = vmatprep.subr.mxu0 0.0
  %398 = vmatpush1.msra.mxu0 0.0
  %399 = vmatprep.subr.mxu0 0.0
  %400 = vmatpush1.msra.mxu0 0.0
  %401 = vmatprep.subr.mxu0 0.0
  %402 = vmatpush1.msra.mxu0 %v217
  %403 = vmatprep.subr.mxu0 0.0
  %404 = vmatpush1.msra.mxu0 %v216
  %405 = vmatprep.subr.mxu0 0.0
  %406 = vmatpush2.msra.mxu0 0.0
  %407 = vmatprep.subr.mxu0 0.0
  %408 = vmatpush2.msra.mxu0 0.0
  %409 = vmatprep.subr.mxu0 0.0
  %410 = vmatpush2.msra.mxu0 0.0
  %411 = vmatprep.subr.mxu0 0.0
  %412 = vmatpush2.msra.mxu0 0.0
  %413 = vmatprep.subr.mxu0 0.0
  %414 = vmatpush2.msra.mxu0 0.0
  %415 = vmatprep.subr.mxu0 0.0
  %416 = vmatpush2.msra.mxu0 0.0
  %417 = vmatprep.subr.mxu0 0.0
  %418 = vmatpush2.msra.mxu0 0.0
  %419 = vmatprep.subr.mxu0 0.0
  %420 = vmatpush2.msra.mxu0 0.0
  %421 = vmatprep.subr.mxu0 0.0
  %422 = vmatpush2.msra.mxu0 0.0
  %423 = vmatprep.subr.mxu0 0.0
  %424 = vmatpush2.msra.mxu0 0.0
  %425 = vmatprep.subr.mxu0 0.0
  %426 = vmatpush2.msra.mxu0 0.0
  %427 = vmatprep.subr.mxu0 0.0
  %428 = vmatpush2.msra.mxu0 0.0
  %429 = vmatprep.subr.mxu0 0.0
  %430 = vmatpush2.msra.mxu0 0.0
  %431 = vmatprep.subr.mxu0 0.0
  %432 = vmatpush2.msra.mxu0 0.0
  %433 = vmatprep.subr.mxu0 0.0
  %434 = vmatpush2.msra.mxu0 0.0
  %435 = vmatprep.subr.mxu0 0.0
  %436 = vmatpush2.msra.mxu0 0.0
  %437 = vmatprep.mubr.f32.mxu0 0.0
  %438 = vmatmul.mubr.f32.gmra.mxu0 %v350
  %v439 = vpop.f32.mrf.mxu0
  %v440 = vadd.f32 0.0, %v439
  %v441 = vpop.f32.mrf.mxu0
  %442 = vmatprep.mubr.f32.mxu0 0.0
  %443 = vmatmul.mubr.f32.gmra.mxu0 %v353
  %v444 = vpop.f32.mrf.mxu0
  %v445 = vadd.f32 0.0, %v444
  %v446 = vpop.f32.mrf.mxu0
  %447 = vmatprep.mubr.f32.mxu0 0.0
  %448 = vmatmul.mubr.f32.gmra.mxu0 %v356
  %v449 = vpop.f32.mrf.mxu0
  %v450 = vadd.f32 0.0, %v449
  %v451 = vpop.f32.mrf.mxu0
  %452 = vmatprep.mubr.f32.mxu0 0.0
  %453 = vmatmul.mubr.f32.gmra.mxu0 %v359
  %v454 = vpop.f32.mrf.mxu0
  %v455 = vadd.f32 0.0, %v454
  %v456 = vpop.f32.mrf.mxu0
  %457 = vmatprep.mubr.f32.mxu0 0.0
  %458 = vmatmul.mubr.f32.gmra.mxu0 %v362
  %v459 = vpop.f32.mrf.mxu0
  %v460 = vadd.f32 0.0, %v459
  %v461 = vpop.f32.mrf.mxu0
  %462 = vmatprep.mubr.f32.mxu0 0.0
  %463 = vmatmul.mubr.f32.gmra.mxu0 %v365
  %v464 = vpop.f32.mrf.mxu0
  %v465 = vadd.f32 0.0, %v464
  %v466 = vpop.f32.mrf.mxu0
  %467 = vmatprep.mubr.f32.mxu0 0.0
  %468 = vmatmul.mubr.f32.gmra.mxu0 %v368
  %v469 = vpop.f32.mrf.mxu0
  %v470 = vadd.f32 0.0, %v469
  %v471 = vpop.f32.mrf.mxu0
  %472 = vmatprep.mubr.f32.mxu0 0.0
  %473 = vmatmul.mubr.f32.gmra.mxu0 %v371
  %v474 = vpop.f32.mrf.mxu0
  %v475 = vadd.f32 0.0, %v474
  %v476 = vpop.f32.mrf.mxu0
  %477 = vdwg.mxu0
  %v479 = vsel %vm348, %v310, 0
  %v482 = vsel %vm348, %v315, 0
  %v485 = vsel %vm348, %v320, 0
  %v488 = vsel %vm348, %v325, 0
  %v491 = vsel %vm348, %v330, 0
  %v494 = vsel %vm348, %v335, 0
  %v497 = vsel %vm348, %v340, 0
  %v500 = vsel %vm348, %v345, 0
  %502 = vmatprep.subr.mxu0 0.0
  %503 = vmatpush1.msra.mxu0 0.0
  %504 = vmatprep.subr.mxu0 0.0
  %505 = vmatpush1.msra.mxu0 0.0
  %506 = vmatprep.subr.mxu0 0.0
  %507 = vmatpush1.msra.mxu0 0.0
  %508 = vmatprep.subr.mxu0 0.0
  %509 = vmatpush1.msra.mxu0 0.0
  %510 = vmatprep.subr.mxu0 0.0
  %511 = vmatpush1.msra.mxu0 0.0
  %512 = vmatprep.subr.mxu0 0.0
  %513 = vmatpush1.msra.mxu0 0.0
  %514 = vmatprep.subr.mxu0 0.0
  %515 = vmatpush1.msra.mxu0 0.0
  %516 = vmatprep.subr.mxu0 0.0
  %517 = vmatpush1.msra.mxu0 0.0
  %518 = vmatprep.subr.mxu0 0.0
  %519 = vmatpush1.msra.mxu0 0.0
  %520 = vmatprep.subr.mxu0 0.0
  %521 = vmatpush1.msra.mxu0 0.0
  %522 = vmatprep.subr.mxu0 0.0
  %523 = vmatpush1.msra.mxu0 0.0
  %524 = vmatprep.subr.mxu0 0.0
  %525 = vmatpush1.msra.mxu0 0.0
  %526 = vmatprep.subr.mxu0 0.0
  %527 = vmatpush1.msra.mxu0 0.0
  %528 = vmatprep.subr.mxu0 0.0
  %529 = vmatpush1.msra.mxu0 0.0
  %530 = vmatprep.subr.mxu0 0.0
  %531 = vmatpush1.msra.mxu0 %v215
  %532 = vmatprep.subr.mxu0 0.0
  %533 = vmatpush1.msra.mxu0 %v214
  %534 = vmatprep.subr.mxu0 0.0
  %535 = vmatpush2.msra.mxu0 0.0
  %536 = vmatprep.subr.mxu0 0.0
  %537 = vmatpush2.msra.mxu0 0.0
  %538 = vmatprep.subr.mxu0 0.0
  %539 = vmatpush2.msra.mxu0 0.0
  %540 = vmatprep.subr.mxu0 0.0
  %541 = vmatpush2.msra.mxu0 0.0
  %542 = vmatprep.subr.mxu0 0.0
  %543 = vmatpush2.msra.mxu0 0.0
  %544 = vmatprep.subr.mxu0 0.0
  %545 = vmatpush2.msra.mxu0 0.0
  %546 = vmatprep.subr.mxu0 0.0
  %547 = vmatpush2.msra.mxu0 0.0
  %548 = vmatprep.subr.mxu0 0.0
  %549 = vmatpush2.msra.mxu0 0.0
  %550 = vmatprep.subr.mxu0 0.0
  %551 = vmatpush2.msra.mxu0 0.0
  %552 = vmatprep.subr.mxu0 0.0
  %553 = vmatpush2.msra.mxu0 0.0
  %554 = vmatprep.subr.mxu0 0.0
  %555 = vmatpush2.msra.mxu0 0.0
  %556 = vmatprep.subr.mxu0 0.0
  %557 = vmatpush2.msra.mxu0 0.0
  %558 = vmatprep.subr.mxu0 0.0
  %559 = vmatpush2.msra.mxu0 0.0
  %560 = vmatprep.subr.mxu0 0.0
  %561 = vmatpush2.msra.mxu0 0.0
  %562 = vmatprep.subr.mxu0 0.0
  %563 = vmatpush2.msra.mxu0 0.0
  %564 = vmatprep.subr.mxu0 0.0
  %565 = vmatpush2.msra.mxu0 0.0
  %566 = vmatprep.mubr.f32.mxu0 0.0
  %567 = vmatmul.mubr.f32.gmra.mxu0 %v479
  %v568 = vpop.f32.mrf.mxu0
  %v569 = vadd.f32 %v440, %v568
  %v570 = vpop.f32.mrf.mxu0
  %571 = vmatprep.mubr.f32.mxu0 0.0
  %572 = vmatmul.mubr.f32.gmra.mxu0 %v482
  %v573 = vpop.f32.mrf.mxu0
  %v574 = vadd.f32 %v445, %v573
  %v575 = vpop.f32.mrf.mxu0
  %576 = vmatprep.mubr.f32.mxu0 0.0
  %577 = vmatmul.mubr.f32.gmra.mxu0 %v485
  %v578 = vpop.f32.mrf.mxu0
  %v579 = vadd.f32 %v450, %v578
  %v580 = vpop.f32.mrf.mxu0
  %581 = vmatprep.mubr.f32.mxu0 0.0
  %582 = vmatmul.mubr.f32.gmra.mxu0 %v488
  %v583 = vpop.f32.mrf.mxu0
  %v584 = vadd.f32 %v455, %v583
  %v585 = vpop.f32.mrf.mxu0
  %586 = vmatprep.mubr.f32.mxu0 0.0
  %587 = vmatmul.mubr.f32.gmra.mxu0 %v491
  %v588 = vpop.f32.mrf.mxu0
  %v589 = vadd.f32 %v460, %v588
  %v590 = vpop.f32.mrf.mxu0
  %591 = vmatprep.mubr.f32.mxu0 0.0
  %592 = vmatmul.mubr.f32.gmra.mxu0 %v494
  %v593 = vpop.f32.mrf.mxu0
  %v594 = vadd.f32 %v465, %v593
  %v595 = vpop.f32.mrf.mxu0
  %596 = vmatprep.mubr.f32.mxu0 0.0
  %597 = vmatmul.mubr.f32.gmra.mxu0 %v497
  %v598 = vpop.f32.mrf.mxu0
  %v599 = vadd.f32 %v470, %v598
  %v600 = vpop.f32.mrf.mxu0
  %601 = vmatprep.mubr.f32.mxu0 0.0
  %602 = vmatmul.mubr.f32.gmra.mxu0 %v500
  %v603 = vpop.f32.mrf.mxu0
  %v604 = vadd.f32 %v475, %v603
  %v605 = vpop.f32.mrf.mxu0
  %606 = vdwg.mxu0
  %v607 = vlaneseq
  %v608 = vshrl.u32 %v607, 7
  %v609 = vsub.s32 0, %v608
  %v610 = vrot.slane %v218, %v609
  %v611 = vadd.f32 %v569, %v610
  %v612 = vadd.f32 %v574, %v610
  %v613 = vadd.f32 %v579, %v610
  %v614 = vadd.f32 %v584, %v610
  %v615 = vadd.f32 %v589, %v610
  %v616 = vadd.f32 %v594, %v610
  %v617 = vadd.f32 %v599, %v610
  %v618 = vadd.f32 %v604, %v610
  %v619 = vmax.f32 %v611, 0.0
  %v620 = vmax.f32 %v612, 0.0
  %v621 = vmax.f32 %v613, 0.0
  %v622 = vmax.f32 %v614, 0.0
  %v623 = vmax.f32 %v615, 0.0
  %v624 = vmax.f32 %v616, 0.0
  %v625 = vmax.f32 %v617, 0.0
  %v626 = vmax.f32 %v618, 0.0
  %v627 = vld [vmem:[%s3 + $0x20] sm:$0xff]
  %v628 = vld [vmem:[%s3 + $0x28] sm:$0xff]
  %v629 = vld [vmem:[%s3 + $0x30] sm:$0xff]
  %v630 = vld [vmem:[%s3 + $0x38] sm:$0xff]
  %v631 = vld [vmem:[%s3 + $0x40] sm:$0xff]
  %v632 = vld [vmem:[%s3 + $0x48] sm:$0xff]
  %v633 = vld [vmem:[%s3 + $0x50] sm:$0xff]
  %v634 = vld [vmem:[%s3 + $0x58] sm:$0xff]
  %v635 = vld [vmem:[%s4 + $0x1] sm:$0x1]
  %636 = vmatprep.subr.mxu0 0.0
  %637 = vmatpush1.msra.mxu0 0.0
  %638 = vmatprep.subr.mxu0 0.0
  %639 = vmatpush1.msra.mxu0 0.0
  %640 = vmatprep.subr.mxu0 0.0
  %641 = vmatpush1.msra.mxu0 0.0
  %642 = vmatprep.subr.mxu0 0.0
  %643 = vmatpush1.msra.mxu0 0.0
  %644 = vmatprep.subr.mxu0 0.0
  %645 = vmatpush1.msra.mxu0 0.0
  %646 = vmatprep.subr.mxu0 0.0
  %647 = vmatpush1.msra.mxu0 0.0
  %648 = vmatprep.subr.mxu0 0.0
  %649 = vmatpush1.msra.mxu0 0.0
  %650 = vmatprep.subr.mxu0 0.0
  %651 = vmatpush1.msra.mxu0 0.0
  %652 = vmatprep.subr.mxu0 0.0
  %653 = vmatpush1.msra.mxu0 %v626
  %654 = vmatprep.subr.mxu0 0.0
  %655 = vmatpush1.msra.mxu0 %v625
  %656 = vmatprep.subr.mxu0 0.0
  %657 = vmatpush1.msra.mxu0 %v624
  %658 = vmatprep.subr.mxu0 0.0
  %659 = vmatpush1.msra.mxu0 %v623
  %660 = vmatprep.subr.mxu0 0.0
  %661 = vmatpush1.msra.mxu0 %v622
  %662 = vmatprep.subr.mxu0 0.0
  %663 = vmatpush1.msra.mxu0 %v621
  %664 = vmatprep.subr.mxu0 0.0
  %665 = vmatpush1.msra.mxu0 %v620
  %666 = vmatprep.subr.mxu0 0.0
  %667 = vmatpush1.msra.mxu0 %v619
  %668 = vmatprep.subr.mxu0 0.0
  %669 = vmatpush2.msra.mxu0 0.0
  %670 = vmatprep.subr.mxu0 0.0
  %671 = vmatpush2.msra.mxu0 0.0
  %672 = vmatprep.subr.mxu0 0.0
  %673 = vmatpush2.msra.mxu0 0.0
  %674 = vmatprep.subr.mxu0 0.0
  %675 = vmatpush2.msra.mxu0 0.0
  %676 = vmatprep.subr.mxu0 0.0
  %677 = vmatpush2.msra.mxu0 0.0
  %678 = vmatprep.subr.mxu0 0.0
  %679 = vmatpush2.msra.mxu0 0.0
  %680 = vmatprep.subr.mxu0 0.0
  %681 = vmatpush2.msra.mxu0 0.0
  %682 = vmatprep.subr.mxu0 0.0
  %683 = vmatpush2.msra.mxu0 0.0
  %684 = vmatprep.subr.mxu0 0.0
  %685 = vmatpush2.msra.mxu0 0.0
  %686 = vmatprep.subr.mxu0 0.0
  %687 = vmatpush2.msra.mxu0 0.0
  %688 = vmatprep.subr.mxu0 0.0
  %689 = vmatpush2.msra.mxu0 0.0
  %690 = vmatprep.subr.mxu0 0.0
  %691 = vmatpush2.msra.mxu0 0.0
  %692 = vmatprep.subr.mxu0 0.0
  %693 = vmatpush2.msra.mxu0 0.0
  %694 = vmatprep.subr.mxu0 0.0
  %695 = vmatpush2.msra.mxu0 0.0
  %696 = vmatprep.subr.mxu0 0.0
  %697 = vmatpush2.msra.mxu0 0.0
  %698 = vmatprep.subr.mxu0 0.0
  %699 = vmatpush2.msra.mxu0 0.0
  %700 = vmatprep.mubr.f32.mxu0 0.0
  %701 = vmatmul.mubr.f32.gmra.mxu0 %v220
  %v702 = vpop.f32.mrf.mxu0
  %v703 = vadd.f32 0.0, %v702
  %v704 = vpop.f32.mrf.mxu0
  %705 = vmatprep.mubr.f32.mxu0 0.0
  %706 = vmatmul.mubr.f32.gmra.mxu0 %v223
  %v707 = vpop.f32.mrf.mxu0
  %v708 = vadd.f32 0.0, %v707
  %v709 = vpop.f32.mrf.mxu0
  %710 = vmatprep.mubr.f32.mxu0 0.0
  %711 = vmatmul.mubr.f32.gmra.mxu0 %v226
  %v712 = vpop.f32.mrf.mxu0
  %v713 = vadd.f32 0.0, %v712
  %v714 = vpop.f32.mrf.mxu0
  %715 = vmatprep.mubr.f32.mxu0 0.0
  %716 = vmatmul.mubr.f32.gmra.mxu0 %v229
  %v717 = vpop.f32.mrf.mxu0
  %v718 = vadd.f32 0.0, %v717
  %v719 = vpop.f32.mrf.mxu0
  %720 = vmatprep.mubr.f32.mxu0 0.0
  %721 = vmatmul.mubr.f32.gmra.mxu0 %v232
  %v722 = vpop.f32.mrf.mxu0
  %v723 = vadd.f32 0.0, %v722
  %v724 = vpop.f32.mrf.mxu0
  %725 = vmatprep.mubr.f32.mxu0 0.0
  %726 = vmatmul.mubr.f32.gmra.mxu0 %v235
  %v727 = vpop.f32.mrf.mxu0
  %v728 = vadd.f32 0.0, %v727
  %v729 = vpop.f32.mrf.mxu0
  %730 = vmatprep.mubr.f32.mxu0 0.0
  %731 = vmatmul.mubr.f32.gmra.mxu0 %v238
  %v732 = vpop.f32.mrf.mxu0
  %v733 = vadd.f32 0.0, %v732
  %v734 = vpop.f32.mrf.mxu0
  %735 = vmatprep.mubr.f32.mxu0 0.0
  %736 = vmatmul.mubr.f32.gmra.mxu0 %v241
  %v737 = vpop.f32.mrf.mxu0
  %v738 = vadd.f32 0.0, %v737
  %v739 = vpop.f32.mrf.mxu0
  %740 = vdwg.mxu0
  %vm741 = vcmask 261120
  %v743 = vsel %vm741, %v619, 0
  %v746 = vsel %vm741, %v620, 0
  %v749 = vsel %vm741, %v621, 0
  %v752 = vsel %vm741, %v622, 0
  %v755 = vsel %vm741, %v623, 0
  %v758 = vsel %vm741, %v624, 0
  %v761 = vsel %vm741, %v625, 0
  %v764 = vsel %vm741, %v626, 0
  %766 = vmatprep.subr.mxu0 0.0
  %767 = vmatpush1.msra.mxu0 0.0
  %768 = vmatprep.subr.mxu0 0.0
  %769 = vmatpush1.msra.mxu0 0.0
  %770 = vmatprep.subr.mxu0 0.0
  %771 = vmatpush1.msra.mxu0 0.0
  %772 = vmatprep.subr.mxu0 0.0
  %773 = vmatpush1.msra.mxu0 0.0
  %774 = vmatprep.subr.mxu0 0.0
  %775 = vmatpush1.msra.mxu0 0.0
  %776 = vmatprep.subr.mxu0 0.0
  %777 = vmatpush1.msra.mxu0 0.0
  %778 = vmatprep.subr.mxu0 0.0
  %779 = vmatpush1.msra.mxu0 0.0
  %780 = vmatprep.subr.mxu0 0.0
  %781 = vmatpush1.msra.mxu0 0.0
  %782 = vmatprep.subr.mxu0 0.0
  %783 = vmatpush1.msra.mxu0 0.0
  %784 = vmatprep.subr.mxu0 0.0
  %785 = vmatpush1.msra.mxu0 0.0
  %786 = vmatprep.subr.mxu0 0.0
  %787 = vmatpush1.msra.mxu0 0.0
  %788 = vmatprep.subr.mxu0 0.0
  %789 = vmatpush1.msra.mxu0 0.0
  %790 = vmatprep.subr.mxu0 0.0
  %791 = vmatpush1.msra.mxu0 %v634
  %792 = vmatprep.subr.mxu0 0.0
  %793 = vmatpush1.msra.mxu0 %v633
  %794 = vmatprep.subr.mxu0 0.0
  %795 = vmatpush1.msra.mxu0 %v632
  %796 = vmatprep.subr.mxu0 0.0
  %797 = vmatpush1.msra.mxu0 %v631
  %798 = vmatprep.subr.mxu0 0.0
  %799 = vmatpush2.msra.mxu0 0.0
  %800 = vmatprep.subr.mxu0 0.0
  %801 = vmatpush2.msra.mxu0 0.0
  %802 = vmatprep.subr.mxu0 0.0
  %803 = vmatpush2.msra.mxu0 0.0
  %804 = vmatprep.subr.mxu0 0.0
  %805 = vmatpush2.msra.mxu0 0.0
  %806 = vmatprep.subr.mxu0 0.0
  %807 = vmatpush2.msra.mxu0 0.0
  %808 = vmatprep.subr.mxu0 0.0
  %809 = vmatpush2.msra.mxu0 0.0
  %810 = vmatprep.subr.mxu0 0.0
  %811 = vmatpush2.msra.mxu0 0.0
  %812 = vmatprep.subr.mxu0 0.0
  %813 = vmatpush2.msra.mxu0 0.0
  %814 = vmatprep.subr.mxu0 0.0
  %815 = vmatpush2.msra.mxu0 0.0
  %816 = vmatprep.subr.mxu0 0.0
  %817 = vmatpush2.msra.mxu0 0.0
  %818 = vmatprep.subr.mxu0 0.0
  %819 = vmatpush2.msra.mxu0 0.0
  %820 = vmatprep.subr.mxu0 0.0
  %821 = vmatpush2.msra.mxu0 0.0
  %822 = vmatprep.subr.mxu0 0.0
  %823 = vmatpush2.msra.mxu0 0.0
  %824 = vmatprep.subr.mxu0 0.0
  %825 = vmatpush2.msra.mxu0 0.0
  %826 = vmatprep.subr.mxu0 0.0
  %827 = vmatpush2.msra.mxu0 0.0
  %828 = vmatprep.subr.mxu0 0.0
  %829 = vmatpush2.msra.mxu0 0.0
  %830 = vmatprep.mubr.f32.mxu0 0.0
  %831 = vmatmul.mubr.f32.gmra.mxu0 %v743
  %v832 = vpop.f32.mrf.mxu0
  %v833 = vadd.f32 0.0, %v832
  %v834 = vpop.f32.mrf.mxu0
  %835 = vmatprep.mubr.f32.mxu0 0.0
  %836 = vmatmul.mubr.f32.gmra.mxu0 %v746
  %v837 = vpop.f32.mrf.mxu0
  %v838 = vadd.f32 0.0, %v837
  %v839 = vpop.f32.mrf.mxu0
  %840 = vmatprep.mubr.f32.mxu0 0.0
  %841 = vmatmul.mubr.f32.gmra.mxu0 %v749
  %v842 = vpop.f32.mrf.mxu0
  %v843 = vadd.f32 0.0, %v842
  %v844 = vpop.f32.mrf.mxu0
  %845 = vmatprep.mubr.f32.mxu0 0.0
  %846 = vmatmul.mubr.f32.gmra.mxu0 %v752
  %v847 = vpop.f32.mrf.mxu0
  %v848 = vadd.f32 0.0, %v847
  %v849 = vpop.f32.mrf.mxu0
  %850 = vmatprep.mubr.f32.mxu0 0.0
  %851 = vmatmul.mubr.f32.gmra.mxu0 %v755
  %v852 = vpop.f32.mrf.mxu0
  %v853 = vadd.f32 0.0, %v852
  %v854 = vpop.f32.mrf.mxu0
  %855 = vmatprep.mubr.f32.mxu0 0.0
  %856 = vmatmul.mubr.f32.gmra.mxu0 %v758
  %v857 = vpop.f32.mrf.mxu0
  %v858 = vadd.f32 0.0, %v857
  %v859 = vpop.f32.mrf.mxu0
  %860 = vmatprep.mubr.f32.mxu0 0.0
  %861 = vmatmul.mubr.f32.gmra.mxu0 %v761
  %v862 = vpop.f32.mrf.mxu0
  %v863 = vadd.f32 0.0, %v862
  %v864 = vpop.f32.mrf.mxu0
  %865 = vmatprep.mubr.f32.mxu0 0.0
  %866 = vmatmul.mubr.f32.gmra.mxu0 %v764
  %v867 = vpop.f32.mrf.mxu0
  %v868 = vadd.f32 0.0, %v867
  %v869 = vpop.f32.mrf.mxu0
  %870 = vdwg.mxu0
  %v872 = vsel %vm741, %v703, 0
  %v875 = vsel %vm741, %v708, 0
  %v878 = vsel %vm741, %v713, 0
  %v881 = vsel %vm741, %v718, 0
  %v884 = vsel %vm741, %v723, 0
  %v887 = vsel %vm741, %v728, 0
  %v890 = vsel %vm741, %v733, 0
  %v893 = vsel %vm741, %v738, 0
  %895 = vmatprep.subr.mxu0 0.0
  %896 = vmatpush1.msra.mxu0 0.0
  %897 = vmatprep.subr.mxu0 0.0
  %898 = vmatpush1.msra.mxu0 0.0
  %899 = vmatprep.subr.mxu0 0.0
  %900 = vmatpush1.msra.mxu0 0.0
  %901 = vmatprep.subr.mxu0 0.0
  %902 = vmatpush1.msra.mxu0 0.0
  %903 = vmatprep.subr.mxu0 0.0
  %904 = vmatpush1.msra.mxu0 0.0
  %905 = vmatprep.subr.mxu0 0.0
  %906 = vmatpush1.msra.mxu0 0.0
  %907 = vmatprep.subr.mxu0 0.0
  %908 = vmatpush1.msra.mxu0 0.0
  %909 = vmatprep.subr.mxu0 0.0
  %910 = vmatpush1.msra.mxu0 0.0
  %911 = vmatprep.subr.mxu0 0.0
  %912 = vmatpush1.msra.mxu0 0.0
  %913 = vmatprep.subr.mxu0 0.0
  %914 = vmatpush1.msra.mxu0 0.0
  %915 = vmatprep.subr.mxu0 0.0
  %916 = vmatpush1.msra.mxu0 0.0
  %917 = vmatprep.subr.mxu0 0.0
  %918 = vmatpush1.msra.mxu0 0.0
  %919 = vmatprep.subr.mxu0 0.0
  %920 = vmatpush1.msra.mxu0 %v630
  %921 = vmatprep.subr.mxu0 0.0
  %922 = vmatpush1.msra.mxu0 %v629
  %923 = vmatprep.subr.mxu0 0.0
  %924 = vmatpush1.msra.mxu0 %v628
  %925 = vmatprep.subr.mxu0 0.0
  %926 = vmatpush1.msra.mxu0 %v627
  %927 = vmatprep.subr.mxu0 0.0
  %928 = vmatpush2.msra.mxu0 0.0
  %929 = vmatprep.subr.mxu0 0.0
  %930 = vmatpush2.msra.mxu0 0.0
  %931 = vmatprep.subr.mxu0 0.0
  %932 = vmatpush2.msra.mxu0 0.0
  %933 = vmatprep.subr.mxu0 0.0
  %934 = vmatpush2.msra.mxu0 0.0
  %935 = vmatprep.subr.mxu0 0.0
  %936 = vmatpush2.msra.mxu0 0.0
  %937 = vmatprep.subr.mxu0 0.0
  %938 = vmatpush2.msra.mxu0 0.0
  %939 = vmatprep.subr.mxu0 0.0
  %940 = vmatpush2.msra.mxu0 0.0
  %941 = vmatprep.subr.mxu0 0.0
  %942 = vmatpush2.msra.mxu0 0.0
  %943 = vmatprep.subr.mxu0 0.0
  %944 = vmatpush2.msra.mxu0 0.0
  %945 = vmatprep.subr.mxu0 0.0
  %946 = vmatpush2.msra.mxu0 0.0
  %947 = vmatprep.subr.mxu0 0.0
  %948 = vmatpush2.msra.mxu0 0.0
  %949 = vmatprep.subr.mxu0 0.0
  %950 = vmatpush2.msra.mxu0 0.0
  %951 = vmatprep.subr.mxu0 0.0
  %952 = vmatpush2.msra.mxu0 0.0
  %953 = vmatprep.subr.mxu0 0.0
  %954 = vmatpush2.msra.mxu0 0.0
  %955 = vmatprep.subr.mxu0 0.0
  %956 = vmatpush2.msra.mxu0 0.0
  %957 = vmatprep.subr.mxu0 0.0
  %958 = vmatpush2.msra.mxu0 0.0
  %959 = vmatprep.mubr.f32.mxu0 0.0
  %960 = vmatmul.mubr.f32.gmra.mxu0 %v872
  %v961 = vpop.f32.mrf.mxu0
  %v962 = vadd.f32 %v833, %v961
  %v963 = vpop.f32.mrf.mxu0
  %964 = vmatprep.mubr.f32.mxu0 0.0
  %965 = vmatmul.mubr.f32.gmra.mxu0 %v875
  %v966 = vpop.f32.mrf.mxu0
  %v967 = vadd.f32 %v838, %v966
  %v968 = vpop.f32.mrf.mxu0
  %969 = vmatprep.mubr.f32.mxu0 0.0
  %970 = vmatmul.mubr.f32.gmra.mxu0 %v878
  %v971 = vpop.f32.mrf.mxu0
  %v972 = vadd.f32 %v843, %v971
  %v973 = vpop.f32.mrf.mxu0
  %974 = vmatprep.mubr.f32.mxu0 0.0
  %975 = vmatmul.mubr.f32.gmra.mxu0 %v881
  %v976 = vpop.f32.mrf.mxu0
  %v977 = vadd.f32 %v848, %v976
  %v978 = vpop.f32.mrf.mxu0
  %979 = vmatprep.mubr.f32.mxu0 0.0
  %980 = vmatmul.mubr.f32.gmra.mxu0 %v884
  %v981 = vpop.f32.mrf.mxu0
  %v982 = vadd.f32 %v853, %v981
  %v983 = vpop.f32.mrf.mxu0
  %984 = vmatprep.mubr.f32.mxu0 0.0
  %985 = vmatmul.mubr.f32.gmra.mxu0 %v887
  %v986 = vpop.f32.mrf.mxu0
  %v987 = vadd.f32 %v858, %v986
  %v988 = vpop.f32.mrf.mxu0
  %989 = vmatprep.mubr.f32.mxu0 0.0
  %990 = vmatmul.mubr.f32.gmra.mxu0 %v890
  %v991 = vpop.f32.mrf.mxu0
  %v992 = vadd.f32 %v863, %v991
  %v993 = vpop.f32.mrf.mxu0
  %994 = vmatprep.mubr.f32.mxu0 0.0
  %995 = vmatmul.mubr.f32.gmra.mxu0 %v893
  %v996 = vpop.f32.mrf.mxu0
  %v997 = vadd.f32 %v868, %v996
  %v998 = vpop.f32.mrf.mxu0
  %999 = vdwg.mxu0
  %v1000 = vlaneseq
  %v1001 = vshrl.u32 %v1000, 7
  %v1002 = vsub.s32 0, %v1001
  %v1003 = vrot.slane %v635, %v1002
  %v1004 = vadd.f32 %v962, %v1003
  %v1005 = vadd.f32 %v967, %v1003
  %v1006 = vadd.f32 %v972, %v1003
  %v1007 = vadd.f32 %v977, %v1003
  %v1008 = vadd.f32 %v982, %v1003
  %v1009 = vadd.f32 %v987, %v1003
  %v1010 = vadd.f32 %v992, %v1003
  %v1011 = vadd.f32 %v997, %v1003
  %v1012 = vmax.f32 %v1004, 0.0
  %v1013 = vmax.f32 %v1005, 0.0
  %v1014 = vmax.f32 %v1006, 0.0
  %v1015 = vmax.f32 %v1007, 0.0
  %v1016 = vmax.f32 %v1008, 0.0
  %v1017 = vmax.f32 %v1009, 0.0
  %v1018 = vmax.f32 %v1010, 0.0
  %v1019 = vmax.f32 %v1011, 0.0
  %v1020 = vld [vmem:[%s3 + $0x60] sm:$0xff]
  %v1021 = vld [vmem:[%s3 + $0x68] sm:$0xff]
  %v1022 = vld [vmem:[%s3 + $0x70] sm:$0xff]
  %v1023 = vld [vmem:[%s3 + $0x78] sm:$0xff]
  %v1024 = vld [vmem:[%s3 + $0x80] sm:$0xff]
  %v1025 = vld [vmem:[%s3 + $0x88] sm:$0xff]
  %v1026 = vld [vmem:[%s3 + $0x90] sm:$0xff]
  %v1027 = vld [vmem:[%s3 + $0x98] sm:$0xff]
  %v1028 = vld [vmem:[%s4 + $0x2] sm:$0x1]
  %1029 = vmatprep.subr.mxu0 0.0
  %1030 = vmatpush1.msra.mxu0 0.0
  %1031 = vmatprep.subr.mxu0 0.0
  %1032 = vmatpush1.msra.mxu0 0.0
  %1033 = vmatprep.subr.mxu0 0.0
  %1034 = vmatpush1.msra.mxu0 0.0
  %1035 = vmatprep.subr.mxu0 0.0
  %1036 = vmatpush1.msra.mxu0 0.0
  %1037 = vmatprep.subr.mxu0 0.0
  %1038 = vmatpush1.msra.mxu0 0.0
  %1039 = vmatprep.subr.mxu0 0.0
  %1040 = vmatpush1.msra.mxu0 0.0
  %1041 = vmatprep.subr.mxu0 0.0
  %1042 = vmatpush1.msra.mxu0 0.0
  %1043 = vmatprep.subr.mxu0 0.0
  %1044 = vmatpush1.msra.mxu0 0.0
  %1045 = vmatprep.subr.mxu0 0.0
  %1046 = vmatpush1.msra.mxu0 %v1019
  %1047 = vmatprep.subr.mxu0 0.0
  %1048 = vmatpush1.msra.mxu0 %v1018
  %1049 = vmatprep.subr.mxu0 0.0
  %1050 = vmatpush1.msra.mxu0 %v1017
  %1051 = vmatprep.subr.mxu0 0.0
  %1052 = vmatpush1.msra.mxu0 %v1016
  %1053 = vmatprep.subr.mxu0 0.0
  %1054 = vmatpush1.msra.mxu0 %v1015
  %1055 = vmatprep.subr.mxu0 0.0
  %1056 = vmatpush1.msra.mxu0 %v1014
  %1057 = vmatprep.subr.mxu0 0.0
  %1058 = vmatpush1.msra.mxu0 %v1013
  %1059 = vmatprep.subr.mxu0 0.0
  %1060 = vmatpush1.msra.mxu0 %v1012
  %1061 = vmatprep.subr.mxu0 0.0
  %1062 = vmatpush2.msra.mxu0 0.0
  %1063 = vmatprep.subr.mxu0 0.0
  %1064 = vmatpush2.msra.mxu0 0.0
  %1065 = vmatprep.subr.mxu0 0.0
  %1066 = vmatpush2.msra.mxu0 0.0
  %1067 = vmatprep.subr.mxu0 0.0
  %1068 = vmatpush2.msra.mxu0 0.0
  %1069 = vmatprep.subr.mxu0 0.0
  %1070 = vmatpush2.msra.mxu0 0.0
  %1071 = vmatprep.subr.mxu0 0.0
  %1072 = vmatpush2.msra.mxu0 0.0
  %1073 = vmatprep.subr.mxu0 0.0
  %1074 = vmatpush2.msra.mxu0 0.0
  %1075 = vmatprep.subr.mxu0 0.0
  %1076 = vmatpush2.msra.mxu0 0.0
  %1077 = vmatprep.subr.mxu0 0.0
  %1078 = vmatpush2.msra.mxu0 0.0
  %1079 = vmatprep.subr.mxu0 0.0
  %1080 = vmatpush2.msra.mxu0 0.0
  %1081 = vmatprep.subr.mxu0 0.0
  %1082 = vmatpush2.msra.mxu0 0.0
  %1083 = vmatprep.subr.mxu0 0.0
  %1084 = vmatpush2.msra.mxu0 0.0
  %1085 = vmatprep.subr.mxu0 0.0
  %1086 = vmatpush2.msra.mxu0 0.0
  %1087 = vmatprep.subr.mxu0 0.0
  %1088 = vmatpush2.msra.mxu0 0.0
  %1089 = vmatprep.subr.mxu0 0.0
  %1090 = vmatpush2.msra.mxu0 0.0
  %1091 = vmatprep.subr.mxu0 0.0
  %1092 = vmatpush2.msra.mxu0 0.0
  %1093 = vmatprep.mubr.f32.mxu0 0.0
  %1094 = vmatmul.mubr.f32.gmra.mxu0 %v220
  %v1095 = vpop.f32.mrf.mxu0
  %v1096 = vadd.f32 0.0, %v1095
  %v1097 = vpop.f32.mrf.mxu0
  %1098 = vmatprep.mubr.f32.mxu0 0.0
  %1099 = vmatmul.mubr.f32.gmra.mxu0 %v223
  %v1100 = vpop.f32.mrf.mxu0
  %v1101 = vadd.f32 0.0, %v1100
  %v1102 = vpop.f32.mrf.mxu0
  %1103 = vmatprep.mubr.f32.mxu0 0.0
  %1104 = vmatmul.mubr.f32.gmra.mxu0 %v226
  %v1105 = vpop.f32.mrf.mxu0
  %v1106 = vadd.f32 0.0, %v1105
  %v1107 = vpop.f32.mrf.mxu0
  %1108 = vmatprep.mubr.f32.mxu0 0.0
  %1109 = vmatmul.mubr.f32.gmra.mxu0 %v229
  %v1110 = vpop.f32.mrf.mxu0
  %v1111 = vadd.f32 0.0, %v1110
  %v1112 = vpop.f32.mrf.mxu0
  %1113 = vmatprep.mubr.f32.mxu0 0.0
  %1114 = vmatmul.mubr.f32.gmra.mxu0 %v232
  %v1115 = vpop.f32.mrf.mxu0
  %v1116 = vadd.f32 0.0, %v1115
  %v1117 = vpop.f32.mrf.mxu0
  %1118 = vmatprep.mubr.f32.mxu0 0.0
  %1119 = vmatmul.mubr.f32.gmra.mxu0 %v235
  %v1120 = vpop.f32.mrf.mxu0
  %v1121 = vadd.f32 0.0, %v1120
  %v1122 = vpop.f32.mrf.mxu0
  %1123 = vmatprep.mubr.f32.mxu0 0.0
  %1124 = vmatmul.mubr.f32.gmra.mxu0 %v238
  %v1125 = vpop.f32.mrf.mxu0
  %v1126 = vadd.f32 0.0, %v1125
  %v1127 = vpop.f32.mrf.mxu0
  %1128 = vmatprep.mubr.f32.mxu0 0.0
  %1129 = vmatmul.mubr.f32.gmra.mxu0 %v241
  %v1130 = vpop.f32.mrf.mxu0
  %v1131 = vadd.f32 0.0, %v1130
  %v1132 = vpop.f32.mrf.mxu0
  %1133 = vdwg.mxu0
  %v1135 = vsel %vm741, %v1012, 0
  %v1138 = vsel %vm741, %v1013, 0
  %v1141 = vsel %vm741, %v1014, 0
  %v1144 = vsel %vm741, %v1015, 0
  %v1147 = vsel %vm741, %v1016, 0
  %v1150 = vsel %vm741, %v1017, 0
  %v1153 = vsel %vm741, %v1018, 0
  %v1156 = vsel %vm741, %v1019, 0
  %1158 = vmatprep.subr.mxu0 0.0
  %1159 = vmatpush1.msra.mxu0 0.0
  %1160 = vmatprep.subr.mxu0 0.0
  %1161 = vmatpush1.msra.mxu0 0.0
  %1162 = vmatprep.subr.mxu0 0.0
  %1163 = vmatpush1.msra.mxu0 0.0
  %1164 = vmatprep.subr.mxu0 0.0
  %1165 = vmatpush1.msra.mxu0 0.0
  %1166 = vmatprep.subr.mxu0 0.0
  %1167 = vmatpush1.msra.mxu0 0.0
  %1168 = vmatprep.subr.mxu0 0.0
  %1169 = vmatpush1.msra.mxu0 0.0
  %1170 = vmatprep.subr.mxu0 0.0
  %1171 = vmatpush1.msra.mxu0 0.0
  %1172 = vmatprep.subr.mxu0 0.0
  %1173 = vmatpush1.msra.mxu0 0.0
  %1174 = vmatprep.subr.mxu0 0.0
  %1175 = vmatpush1.msra.mxu0 0.0
  %1176 = vmatprep.subr.mxu0 0.0
  %1177 = vmatpush1.msra.mxu0 0.0
  %1178 = vmatprep.subr.mxu0 0.0
  %1179 = vmatpush1.msra.mxu0 0.0
  %1180 = vmatprep.subr.mxu0 0.0
  %1181 = vmatpush1.msra.mxu0 0.0
  %1182 = vmatprep.subr.mxu0 0.0
  %1183 = vmatpush1.msra.mxu0 %v1027
  %1184 = vmatprep.subr.mxu0 0.0
  %1185 = vmatpush1.msra.mxu0 %v1026
  %1186 = vmatprep.subr.mxu0 0.0
  %1187 = vmatpush1.msra.mxu0 %v1025
  %1188 = vmatprep.subr.mxu0 0.0
  %1189 = vmatpush1.msra.mxu0 %v1024
  %1190 = vmatprep.subr.mxu0 0.0
  %1191 = vmatpush2.msra.mxu0 0.0
  %1192 = vmatprep.subr.mxu0 0.0
  %1193 = vmatpush2.msra.mxu0 0.0
  %1194 = vmatprep.subr.mxu0 0.0
  %1195 = vmatpush2.msra.mxu0 0.0
  %1196 = vmatprep.subr.mxu0 0.0
  %1197 = vmatpush2.msra.mxu0 0.0
  %1198 = vmatprep.subr.mxu0 0.0
  %1199 = vmatpush2.msra.mxu0 0.0
  %1200 = vmatprep.subr.mxu0 0.0
  %1201 = vmatpush2.msra.mxu0 0.0
  %1202 = vmatprep.subr.mxu0 0.0
  %1203 = vmatpush2.msra.mxu0 0.0
  %1204 = vmatprep.subr.mxu0 0.0
  %1205 = vmatpush2.msra.mxu0 0.0
  %1206 = vmatprep.subr.mxu0 0.0
  %1207 = vmatpush2.msra.mxu0 0.0
  %1208 = vmatprep.subr.mxu0 0.0
  %1209 = vmatpush2.msra.mxu0 0.0
  %1210 = vmatprep.subr.mxu0 0.0
  %1211 = vmatpush2.msra.mxu0 0.0
  %1212 = vmatprep.subr.mxu0 0.0
  %1213 = vmatpush2.msra.mxu0 0.0
  %1214 = vmatprep.subr.mxu0 0.0
  %1215 = vmatpush2.msra.mxu0 0.0
  %1216 = vmatprep.subr.mxu0 0.0
  %1217 = vmatpush2.msra.mxu0 0.0
  %1218 = vmatprep.subr.mxu0 0.0
  %1219 = vmatpush2.msra.mxu0 0.0
  %1220 = vmatprep.subr.mxu0 0.0
  %1221 = vmatpush2.msra.mxu0 0.0
  %1222 = vmatprep.mubr.f32.mxu0 0.0
  %1223 = vmatmul.mubr.f32.gmra.mxu0 %v1135
  %v1224 = vpop.f32.mrf.mxu0
  %v1225 = vadd.f32 0.0, %v1224
  %v1226 = vpop.f32.mrf.mxu0
  %1227 = vmatprep.mubr.f32.mxu0 0.0
  %1228 = vmatmul.mubr.f32.gmra.mxu0 %v1138
  %v1229 = vpop.f32.mrf.mxu0
  %v1230 = vadd.f32 0.0, %v1229
  %v1231 = vpop.f32.mrf.mxu0
  %1232 = vmatprep.mubr.f32.mxu0 0.0
  %1233 = vmatmul.mubr.f32.gmra.mxu0 %v1141
  %v1234 = vpop.f32.mrf.mxu0
  %v1235 = vadd.f32 0.0, %v1234
  %v1236 = vpop.f32.mrf.mxu0
  %1237 = vmatprep.mubr.f32.mxu0 0.0
  %1238 = vmatmul.mubr.f32.gmra.mxu0 %v1144
  %v1239 = vpop.f32.mrf.mxu0
  %v1240 = vadd.f32 0.0, %v1239
  %v1241 = vpop.f32.mrf.mxu0
  %1242 = vmatprep.mubr.f32.mxu0 0.0
  %1243 = vmatmul.mubr.f32.gmra.mxu0 %v1147
  %v1244 = vpop.f32.mrf.mxu0
  %v1245 = vadd.f32 0.0, %v1244
  %v1246 = vpop.f32.mrf.mxu0
  %1247 = vmatprep.mubr.f32.mxu0 0.0
  %1248 = vmatmul.mubr.f32.gmra.mxu0 %v1150
  %v1249 = vpop.f32.mrf.mxu0
  %v1250 = vadd.f32 0.0, %v1249
  %v1251 = vpop.f32.mrf.mxu0
  %1252 = vmatprep.mubr.f32.mxu0 0.0
  %1253 = vmatmul.mubr.f32.gmra.mxu0 %v1153
  %v1254 = vpop.f32.mrf.mxu0
  %v1255 = vadd.f32 0.0, %v1254
  %v1256 = vpop.f32.mrf.mxu0
  %1257 = vmatprep.mubr.f32.mxu0 0.0
  %1258 = vmatmul.mubr.f32.gmra.mxu0 %v1156
  %v1259 = vpop.f32.mrf.mxu0
  %v1260 = vadd.f32 0.0, %v1259
  %v1261 = vpop.f32.mrf.mxu0
  %1262 = vdwg.mxu0
  %v1264 = vsel %vm741, %v1096, 0
  %v1267 = vsel %vm741, %v1101, 0
  %v1270 = vsel %vm741, %v1106, 0
  %v1273 = vsel %vm741, %v1111, 0
  %v1276 = vsel %vm741, %v1116, 0
  %v1279 = vsel %vm741, %v1121, 0
  %v1282 = vsel %vm741, %v1126, 0
  %v1285 = vsel %vm741, %v1131, 0
  %1287 = vmatprep.subr.mxu0 0.0
  %1288 = vmatpush1.msra.mxu0 0.0
  %1289 = vmatprep.subr.mxu0 0.0
  %1290 = vmatpush1.msra.mxu0 0.0
  %1291 = vmatprep.subr.mxu0 0.0
  %1292 = vmatpush1.msra.mxu0 0.0
  %1293 = vmatprep.subr.mxu0 0.0
  %1294 = vmatpush1.msra.mxu0 0.0
  %1295 = vmatprep.subr.mxu0 0.0
  %1296 = vmatpush1.msra.mxu0 0.0
  %1297 = vmatprep.subr.mxu0 0.0
  %1298 = vmatpush1.msra.mxu0 0.0
  %1299 = vmatprep.subr.mxu0 0.0
  %1300 = vmatpush1.msra.mxu0 0.0
  %1301 = vmatprep.subr.mxu0 0.0
  %1302 = vmatpush1.msra.mxu0 0.0
  %1303 = vmatprep.subr.mxu0 0.0
  %1304 = vmatpush1.msra.mxu0 0.0
  %1305 = vmatprep.subr.mxu0 0.0
  %1306 = vmatpush1.msra.mxu0 0.0
  %1307 = vmatprep.subr.mxu0 0.0
  %1308 = vmatpush1.msra.mxu0 0.0
  %1309 = vmatprep.subr.mxu0 0.0
  %1310 = vmatpush1.msra.mxu0 0.0
  %1311 = vmatprep.subr.mxu0 0.0
  %1312 = vmatpush1.msra.mxu0 %v1023
  %1313 = vmatprep.subr.mxu0 0.0
  %1314 = vmatpush1.msra.mxu0 %v1022
  %1315 = vmatprep.subr.mxu0 0.0
  %1316 = vmatpush1.msra.mxu0 %v1021
  %1317 = vmatprep.subr.mxu0 0.0
  %1318 = vmatpush1.msra.mxu0 %v1020
  %1319 = vmatprep.subr.mxu0 0.0
  %1320 = vmatpush2.msra.mxu0 0.0
  %1321 = vmatprep.subr.mxu0 0.0
  %1322 = vmatpush2.msra.mxu0 0.0
  %1323 = vmatprep.subr.mxu0 0.0
  %1324 = vmatpush2.msra.mxu0 0.0
  %1325 = vmatprep.subr.mxu0 0.0
  %1326 = vmatpush2.msra.mxu0 0.0
  %1327 = vmatprep.subr.mxu0 0.0
  %1328 = vmatpush2.msra.mxu0 0.0
  %1329 = vmatprep.subr.mxu0 0.0
  %1330 = vmatpush2.msra.mxu0 0.0
  %1331 = vmatprep.subr.mxu0 0.0
  %1332 = vmatpush2.msra.mxu0 0.0
  %1333 = vmatprep.subr.mxu0 0.0
  %1334 = vmatpush2.msra.mxu0 0.0
  %1335 = vmatprep.subr.mxu0 0.0
  %1336 = vmatpush2.msra.mxu0 0.0
  %1337 = vmatprep.subr.mxu0 0.0
  %1338 = vmatpush2.msra.mxu0 0.0
  %1339 = vmatprep.subr.mxu0 0.0
  %1340 = vmatpush2.msra.mxu0 0.0
  %1341 = vmatprep.subr.mxu0 0.0
  %1342 = vmatpush2.msra.mxu0 0.0
  %1343 = vmatprep.subr.mxu0 0.0
  %1344 = vmatpush2.msra.mxu0 0.0
  %1345 = vmatprep.subr.mxu0 0.0
  %1346 = vmatpush2.msra.mxu0 0.0
  %1347 = vmatprep.subr.mxu0 0.0
  %1348 = vmatpush2.msra.mxu0 0.0
  %1349 = vmatprep.subr.mxu0 0.0
  %1350 = vmatpush2.msra.mxu0 0.0
  %1351 = vmatprep.mubr.f32.mxu0 0.0
  %1352 = vmatmul.mubr.f32.gmra.mxu0 %v1264
  %v1353 = vpop.f32.mrf.mxu0
  %v1354 = vadd.f32 %v1225, %v1353
  %v1355 = vpop.f32.mrf.mxu0
  %1356 = vmatprep.mubr.f32.mxu0 0.0
  %1357 = vmatmul.mubr.f32.gmra.mxu0 %v1267
  %v1358 = vpop.f32.mrf.mxu0
  %v1359 = vadd.f32 %v1230, %v1358
  %v1360 = vpop.f32.mrf.mxu0
  %1361 = vmatprep.mubr.f32.mxu0 0.0
  %1362 = vmatmul.mubr.f32.gmra.mxu0 %v1270
  %v1363 = vpop.f32.mrf.mxu0
  %v1364 = vadd.f32 %v1235, %v1363
  %v1365 = vpop.f32.mrf.mxu0
  %1366 = vmatprep.mubr.f32.mxu0 0.0
  %1367 = vmatmul.mubr.f32.gmra.mxu0 %v1273
  %v1368 = vpop.f32.mrf.mxu0
  %v1369 = vadd.f32 %v1240, %v1368
  %v1370 = vpop.f32.mrf.mxu0
  %1371 = vmatprep.mubr.f32.mxu0 0.0
  %1372 = vmatmul.mubr.f32.gmra.mxu0 %v1276
  %v1373 = vpop.f32.mrf.mxu0
  %v1374 = vadd.f32 %v1245, %v1373
  %v1375 = vpop.f32.mrf.mxu0
  %1376 = vmatprep.mubr.f32.mxu0 0.0
  %1377 = vmatmul.mubr.f32.gmra.mxu0 %v1279
  %v1378 = vpop.f32.mrf.mxu0
  %v1379 = vadd.f32 %v1250, %v1378
  %v1380 = vpop.f32.mrf.mxu0
  %1381 = vmatprep.mubr.f32.mxu0 0.0
  %1382 = vmatmul.mubr.f32.gmra.mxu0 %v1282
  %v1383 = vpop.f32.mrf.mxu0
  %v1384 = vadd.f32 %v1255, %v1383
  %v1385 = vpop.f32.mrf.mxu0
  %1386 = vmatprep.mubr.f32.mxu0 0.0
  %1387 = vmatmul.mubr.f32.gmra.mxu0 %v1285
  %v1388 = vpop.f32.mrf.mxu0
  %v1389 = vadd.f32 %v1260, %v1388
  %v1390 = vpop.f32.mrf.mxu0
  %1391 = vdwg.mxu0
  %v1392 = vlaneseq
  %v1393 = vshrl.u32 %v1392, 7
  %v1394 = vsub.s32 0, %v1393
  %v1395 = vrot.slane %v1028, %v1394
  %v1396 = vadd.f32 %v1354, %v1395
  %v1397 = vadd.f32 %v1359, %v1395
  %v1398 = vadd.f32 %v1364, %v1395
  %v1399 = vadd.f32 %v1369, %v1395
  %v1400 = vadd.f32 %v1374, %v1395
  %v1401 = vadd.f32 %v1379, %v1395
  %v1402 = vadd.f32 %v1384, %v1395
  %v1403 = vadd.f32 %v1389, %v1395
  %v1404 = vld [vmem:[%s3 + $0xa0] sm:$0xff]
  %v1405 = vld [vmem:[%s3 + $0xa8] sm:$0xff]
  %v1406 = vld [vmem:[%s3 + $0xb0] sm:$0xff]
  %v1407 = vld [vmem:[%s3 + $0xb8] sm:$0xff]
  %v1409 = vsel %vm741, %v1396, 0
  %v1412 = vsel %vm741, %v1397, 0
  %v1415 = vsel %vm741, %v1398, 0
  %v1418 = vsel %vm741, %v1399, 0
  %v1421 = vsel %vm741, %v1400, 0
  %v1424 = vsel %vm741, %v1401, 0
  %v1427 = vsel %vm741, %v1402, 0
  %v1430 = vsel %vm741, %v1403, 0
  %1432 = vmatprep.subr.mxu0 0.0
  %1433 = vmatpush1.msra.mxu0 0.0
  %1434 = vmatprep.subr.mxu0 0.0
  %1435 = vmatpush1.msra.mxu0 0.0
  %1436 = vmatprep.subr.mxu0 0.0
  %1437 = vmatpush1.msra.mxu0 0.0
  %1438 = vmatprep.subr.mxu0 0.0
  %1439 = vmatpush1.msra.mxu0 0.0
  %1440 = vmatprep.subr.mxu0 0.0
  %1441 = vmatpush1.msra.mxu0 0.0
  %1442 = vmatprep.subr.mxu0 0.0
  %1443 = vmatpush1.msra.mxu0 0.0
  %1444 = vmatprep.subr.mxu0 0.0
  %1445 = vmatpush1.msra.mxu0 0.0
  %1446 = vmatprep.subr.mxu0 0.0
  %1447 = vmatpush1.msra.mxu0 0.0
  %1448 = vmatprep.subr.mxu0 0.0
  %1449 = vmatpush1.msra.mxu0 0.0
  %1450 = vmatprep.subr.mxu0 0.0
  %1451 = vmatpush1.msra.mxu0 0.0
  %1452 = vmatprep.subr.mxu0 0.0
  %1453 = vmatpush1.msra.mxu0 0.0
  %1454 = vmatprep.subr.mxu0 0.0
  %1455 = vmatpush1.msra.mxu0 0.0
  %1456 = vmatprep.subr.mxu0 0.0
  %1457 = vmatpush1.msra.mxu0 %v1407
  %1458 = vmatprep.subr.mxu0 0.0
  %1459 = vmatpush1.msra.mxu0 %v1406
  %1460 = vmatprep.subr.mxu0 0.0
  %1461 = vmatpush1.msra.mxu0 %v1405
  %1462 = vmatprep.subr.mxu0 0.0
  %1463 = vmatpush1.msra.mxu0 %v1404
  %1464 = vmatprep.subr.mxu0 0.0
  %1465 = vmatpush2.msra.mxu0 0.0
  %1466 = vmatprep.subr.mxu0 0.0
  %1467 = vmatpush2.msra.mxu0 0.0
  %1468 = vmatprep.subr.mxu0 0.0
  %1469 = vmatpush2.msra.mxu0 0.0
  %1470 = vmatprep.subr.mxu0 0.0
  %1471 = vmatpush2.msra.mxu0 0.0
  %1472 = vmatprep.subr.mxu0 0.0
  %1473 = vmatpush2.msra.mxu0 0.0
  %1474 = vmatprep.subr.mxu0 0.0
  %1475 = vmatpush2.msra.mxu0 0.0
  %1476 = vmatprep.subr.mxu0 0.0
  %1477 = vmatpush2.msra.mxu0 0.0
  %1478 = vmatprep.subr.mxu0 0.0
  %1479 = vmatpush2.msra.mxu0 0.0
  %1480 = vmatprep.subr.mxu0 0.0
  %1481 = vmatpush2.msra.mxu0 0.0
  %1482 = vmatprep.subr.mxu0 0.0
  %1483 = vmatpush2.msra.mxu0 0.0
  %1484 = vmatprep.subr.mxu0 0.0
  %1485 = vmatpush2.msra.mxu0 0.0
  %1486 = vmatprep.subr.mxu0 0.0
  %1487 = vmatpush2.msra.mxu0 0.0
  %1488 = vmatprep.subr.mxu0 0.0
  %1489 = vmatpush2.msra.mxu0 0.0
  %1490 = vmatprep.subr.mxu0 0.0
  %1491 = vmatpush2.msra.mxu0 0.0
  %1492 = vmatprep.subr.mxu0 0.0
  %1493 = vmatpush2.msra.mxu0 0.0
  %1494 = vmatprep.subr.mxu0 0.0
  %1495 = vmatpush2.msra.mxu0 0.0
  %1496 = vmatprep.mubr.f32.mxu0 0.0
  %1497 = vmatmul.mubr.f32.gmra.mxu0 %v1409
  %v1498 = vpop.f32.mrf.mxu0
  %v1499 = vadd.f32 0.0, %v1498
  %v1500 = vpop.f32.mrf.mxu0
  %1501 = vmatprep.mubr.f32.mxu0 0.0
  %1502 = vmatmul.mubr.f32.gmra.mxu0 %v1412
  %v1503 = vpop.f32.mrf.mxu0
  %v1504 = vadd.f32 0.0, %v1503
  %v1505 = vpop.f32.mrf.mxu0
  %1506 = vmatprep.mubr.f32.mxu0 0.0
  %1507 = vmatmul.mubr.f32.gmra.mxu0 %v1415
  %v1508 = vpop.f32.mrf.mxu0
  %v1509 = vadd.f32 0.0, %v1508
  %v1510 = vpop.f32.mrf.mxu0
  %1511 = vmatprep.mubr.f32.mxu0 0.0
  %1512 = vmatmul.mubr.f32.gmra.mxu0 %v1418
  %v1513 = vpop.f32.mrf.mxu0
  %v1514 = vadd.f32 0.0, %v1513
  %v1515 = vpop.f32.mrf.mxu0
  %1516 = vmatprep.mubr.f32.mxu0 0.0
  %1517 = vmatmul.mubr.f32.gmra.mxu0 %v1421
  %v1518 = vpop.f32.mrf.mxu0
  %v1519 = vadd.f32 0.0, %v1518
  %v1520 = vpop.f32.mrf.mxu0
  %1521 = vmatprep.mubr.f32.mxu0 0.0
  %1522 = vmatmul.mubr.f32.gmra.mxu0 %v1424
  %v1523 = vpop.f32.mrf.mxu0
  %v1524 = vadd.f32 0.0, %v1523
  %v1525 = vpop.f32.mrf.mxu0
  %1526 = vmatprep.mubr.f32.mxu0 0.0
  %1527 = vmatmul.mubr.f32.gmra.mxu0 %v1427
  %v1528 = vpop.f32.mrf.mxu0
  %v1529 = vadd.f32 0.0, %v1528
  %v1530 = vpop.f32.mrf.mxu0
  %1531 = vmatprep.mubr.f32.mxu0 0.0
  %1532 = vmatmul.mubr.f32.gmra.mxu0 %v1430
  %v1533 = vpop.f32.mrf.mxu0
  %v1534 = vadd.f32 0.0, %v1533
  %v1535 = vpop.f32.mrf.mxu0
  %1536 = vdwg.mxu0
  %v1537 = vld [vmem:[%s4 + $0x3] sm:$0x1]
  %v1538 = vlaneseq
  %v1539 = vshrl.u32 %v1538, 7
  %v1540 = vsub.s32 0, %v1539
  %v1541 = vrot.slane %v1537, %v1540
  %v1543 = vsel %vm199, %v205, 0
  %1545 = vmatprep.subr.mxu0 0.0
  %1546 = vmatpush1.msra.mxu0 0.0
  %1547 = vmatprep.subr.mxu0 0.0
  %1548 = vmatpush1.msra.mxu0 0.0
  %1549 = vmatprep.subr.mxu0 0.0
  %1550 = vmatpush1.msra.mxu0 0.0
  %1551 = vmatprep.subr.mxu0 0.0
  %1552 = vmatpush1.msra.mxu0 0.0
  %1553 = vmatprep.subr.mxu0 0.0
  %1554 = vmatpush1.msra.mxu0 0.0
  %1555 = vmatprep.subr.mxu0 0.0
  %1556 = vmatpush1.msra.mxu0 0.0
  %1557 = vmatprep.subr.mxu0 0.0
  %1558 = vmatpush1.msra.mxu0 0.0
  %1559 = vmatprep.subr.mxu0 0.0
  %1560 = vmatpush1.msra.mxu0 0.0
  %1561 = vmatprep.subr.mxu0 0.0
  %1562 = vmatpush1.msra.mxu0 %v1534
  %1563 = vmatprep.subr.mxu0 0.0
  %1564 = vmatpush1.msra.mxu0 %v1529
  %1565 = vmatprep.subr.mxu0 0.0
  %1566 = vmatpush1.msra.mxu0 %v1524
  %1567 = vmatprep.subr.mxu0 0.0
  %1568 = vmatpush1.msra.mxu0 %v1519
  %1569 = vmatprep.subr.mxu0 0.0
  %1570 = vmatpush1.msra.mxu0 %v1514
  %1571 = vmatprep.subr.mxu0 0.0
  %1572 = vmatpush1.msra.mxu0 %v1509
  %1573 = vmatprep.subr.mxu0 0.0
  %1574 = vmatpush1.msra.mxu0 %v1504
  %1575 = vmatprep.subr.mxu0 0.0
  %1576 = vmatpush1.msra.mxu0 %v1499
  %1577 = vmatprep.subr.mxu0 0.0
  %1578 = vmatpush2.msra.mxu0 0.0
  %1579 = vmatprep.subr.mxu0 0.0
  %1580 = vmatpush2.msra.mxu0 0.0
  %1581 = vmatprep.subr.mxu0 0.0
  %1582 = vmatpush2.msra.mxu0 0.0
  %1583 = vmatprep.subr.mxu0 0.0
  %1584 = vmatpush2.msra.mxu0 0.0
  %1585 = vmatprep.subr.mxu0 0.0
  %1586 = vmatpush2.msra.mxu0 0.0
  %1587 = vmatprep.subr.mxu0 0.0
  %1588 = vmatpush2.msra.mxu0 0.0
  %1589 = vmatprep.subr.mxu0 0.0
  %1590 = vmatpush2.msra.mxu0 0.0
  %1591 = vmatprep.subr.mxu0 0.0
  %1592 = vmatpush2.msra.mxu0 0.0
  %1593 = vmatprep.subr.mxu0 0.0
  %1594 = vmatpush2.msra.mxu0 0.0
  %1595 = vmatprep.subr.mxu0 0.0
  %1596 = vmatpush2.msra.mxu0 0.0
  %1597 = vmatprep.subr.mxu0 0.0
  %1598 = vmatpush2.msra.mxu0 0.0
  %1599 = vmatprep.subr.mxu0 0.0
  %1600 = vmatpush2.msra.mxu0 0.0
  %1601 = vmatprep.subr.mxu0 0.0
  %1602 = vmatpush2.msra.mxu0 0.0
  %1603 = vmatprep.subr.mxu0 0.0
  %1604 = vmatpush2.msra.mxu0 0.0
  %1605 = vmatprep.subr.mxu0 0.0
  %1606 = vmatpush2.msra.mxu0 0.0
  %1607 = vmatprep.subr.mxu0 0.0
  %1608 = vmatpush2.msra.mxu0 0.0
  %1609 = vmatprep.mubr.f32.mxu0 0.0
  %1610 = vmatmul.mubr.f32.gmra.mxu0 %v1543
  %v1611 = vpop.f32.mrf.mxu0
  %v1612 = vadd.f32 %v1541, %v1611
  %v1613 = vpop.f32.mrf.mxu0
  %1614 = vdwg.mxu0
  %vm1615 = vcmask 31744
  %1616 = vst.msk [vmem:[%s5] sm:$0xff] %vm1615, %v1612
  // Predicated region
  $region22: #{tpu_custom_call.1} parent=0 // pred_check
    _
  $region23: #{tpu_custom_call.1} parent=0 // pred_check_branch
    %1618 = sbr.rel (0) target = $region25
  $region24: #{tpu_custom_call.1} parent=0 // pred_region
    _
  $region25: #{tpu_custom_call.1} parent=0 // pred_fallthru
    _
  // Predicated region
  $region26: #{tpu_custom_call.1} parent=0 // pred_check
    _
  $region27: #{tpu_custom_call.1} parent=0 // pred_check_branch
    %1620 = sbr.rel (0) target = $region29
  $region28: #{tpu_custom_call.1} parent=0 // pred_region
    _
  $region29: #{tpu_custom_call.1} parent=0 // pred_fallthru
    _

</llo_original>
